<compile_context>
chip_gen: v7x
topology: tpu7x:2x2x1
jax: 0.10.0
libtpu: 0.0.40
codegen_flags: <defaults>
</compile_context>

<pallas_src>
import jax
import jax.numpy as jnp
from jax.experimental import pallas as pl
from jax.experimental.pallas import tpu as pltpu

_VMEM_LIMIT = 32 * 1024 * 1024


def _round_up(x, m):
    return ((x + m - 1) // m) * m


# ----------------------------- Pallas kernels ------------------------------

def _make_conv3x3_kernel(shifts, guard, tm, num_m_blocks,
                         use_pro, use_epi, use_res):
    """3x3 / stride-1 conv as 9 shifted matmuls over a VMEM-resident flattened
    padded activation.  The BN+ReLU prologue is computed once per M-block into
    a VMEM scratch window (not per tap / per Cout tile); conv bias, residual
    add and BN+ReLU epilogue are fused."""

    def kernel(*refs):
        x_ref, w_ref, cb_ref = refs[0], refs[1], refs[2]
        k = 3
        if use_pro:
            ps_ref, pb_ref = refs[k], refs[k + 1]
            k += 2
        if use_epi:
            es_ref, eb_ref = refs[k], refs[k + 1]
            k += 2
        if use_res:
            r_ref = refs[k]
            k += 1
        o_ref = refs[k]
        a_scr = refs[k + 1] if use_pro else None

        if num_m_blocks == 1:
            row0 = 0                                    # static start
        else:
            row0 = pl.multiple_of(pl.program_id(0) * tm, tm)

        if use_pro:
            # Prologue hoisted out of the 9-tap loop and all Cout tiles:
            # one fused BN+ReLU pass per M-block into VMEM scratch.
            @pl.when(pl.program_id(1) == 0)
            def _():
                win = tm + 2 * guard
                a = x_ref[pl.ds(row0, win), :].astype(jnp.float32)
                a_scr[...] = jnp.maximum(a * ps_ref[...] + pb_ref[...], 0.0)

        acc = jnp.zeros(o_ref.shape, jnp.float32)
        for t, d in enumerate(shifts):
            if use_pro:
                a = a_scr[pl.ds(guard + d, tm), :]
            else:
                a = x_ref[pl.ds(row0 + (guard + d), tm), :]
            acc = acc + jnp.dot(a.astype(jnp.bfloat16), w_ref[t],
                                preferred_element_type=jnp.float32)

        out = acc + cb_ref[...]
        if use_res:
            out = out + r_ref[...].astype(jnp.float32)
        if use_epi:
            out = jnp.maximum(out * es_ref[...] + eb_ref[...], 0.0)
        o_ref[...] = out.astype(o_ref.dtype)

    return kernel


def _matmul_bias_kernel(a_ref, w_ref, b_ref, o_ref, acc_ref):
    # (tm, tk) @ (tk, tn) + bias; K tiled on the trailing ("arbitrary") axis.
    @pl.when(pl.program_id(2) == 0)
    def _():
        acc_ref[...] = jnp.zeros_like(acc_ref)

    acc_ref[...] += jnp.dot(a_ref[...], w_ref[...],
                            preferred_element_type=jnp.float32)

    # Bias add + store only on the last K step.
    @pl.when(pl.program_id(2) == pl.num_programs(2) - 1)
    def _():
        o_ref[...] = (acc_ref[...] + b_ref[...]).astype(o_ref.dtype)


def _bn_relu_kernel(x_ref, s_ref, b_ref, o_ref):
    x = x_ref[...].astype(jnp.float32)
    o_ref[...] = jnp.maximum(x * s_ref[...] + b_ref[...], 0.0).astype(o_ref.dtype)


def _pool_linear_kernel(x_ref, w_ref, b_ref, o_ref):
    pooled = jnp.mean(x_ref[...].astype(jnp.float32), axis=1)      # (N, C)
    o_ref[...] = (jnp.dot(pooled, w_ref[...],
                          preferred_element_type=jnp.float32) + b_ref[...])


# ------------------------------ Pallas wrappers -----------------------------

def conv3x3_s1(x, w_taps, cbias, pro_scale=None, pro_bias=None,
               epi_scale=None, epi_bias=None, residual=None):
    """3x3, stride-1, pad-1 convolution (shifted-matmul path).

    x: (N,H,W,Cin); w_taps: (9,Cin,Cout) bf16 (tap-major); cbias: (Cout,) f32.
    Returns bf16 (N,H,W,Cout).
    """
    N, H, W, Cin = x.shape
    Cout = w_taps.shape[-1]
    Hp, Wp = H + 2, W + 2
    M = N * Hp * Wp
    tm = 128 if M >= 128 else _round_up(M, 16)
    M_pad = _round_up(M, tm)
    tn = Cout if Cout <= 256 else 256
    guard = _round_up(Wp + 1, 8)
    # Shift-window invariant: every tap offset (|d| <= Wp+1) stays inside the
    # guard band, and guard rows only feed outputs at padded spatial positions
    # that are sliced away below.
    assert guard >= Wp + 1 and guard % 8 == 0

    use_pro = pro_scale is not None
    use_epi = epi_scale is not None
    use_res = residual is not None

    # Guarded, flattened, padded input (bf16 when the prologue is fused).
    if use_pro:
        # Padding positions pre-filled with -sign(scale)*BIG so the fused
        # BN+ReLU prologue maps them to exactly 0 (reference pads with zeros
        # AFTER BN+ReLU).
        pad_fill = jnp.where(pro_scale >= 0, -1e30, 1e30).astype(jnp.bfloat16)
        xp = jnp.broadcast_to(pad_fill.reshape(1, 1, 1, Cin), (N, Hp, Wp, Cin))
        xp = xp.at[:, 1:H + 1, 1:W + 1, :].set(x.astype(jnp.bfloat16))
    else:
        xp = jnp.pad(x.astype(jnp.float32), ((0, 0), (1, 1), (1, 1), (0, 0)))
    xg = xp.reshape(M, Cin)
    xg = jnp.pad(xg, ((guard, guard + M_pad - M), (0, 0)))
    Mg = xg.shape[0]

    args = [xg, w_taps, cbias.reshape(1, Cout)]
    in_specs = [pl.BlockSpec((Mg, Cin), lambda i, j: (0, 0)),        # resident
                pl.BlockSpec((9, Cin, tn), lambda i, j: (0, 0, j)),
                pl.BlockSpec((1, tn), lambda i, j: (0, j))]
    if use_pro:
        args += [pro_scale.reshape(1, Cin), pro_bias.reshape(1, Cin)]
        in_specs += [pl.BlockSpec((1, Cin), lambda i, j: (0, 0)),
                     pl.BlockSpec((1, Cin), lambda i, j: (0, 0))]
    if use_epi:
        args += [epi_scale.reshape(1, Cout), epi_bias.reshape(1, Cout)]
        in_specs += [pl.BlockSpec((1, tn), lambda i, j: (0, j)),
                     pl.BlockSpec((1, tn), lambda i, j: (0, j))]
    if use_res:
        rp = jnp.pad(residual.astype(jnp.bfloat16),
                     ((0, 0), (1, 1), (1, 1), (0, 0))).reshape(M, Cout)
        rp = jnp.pad(rp, ((0, M_pad - M), (0, 0)))
        args.append(rp)
        in_specs.append(pl.BlockSpec((tm, tn), lambda i, j: (i, j)))

    shifts = tuple((ki - 1) * Wp + (kj - 1)
                   for ki in range(3) for kj in range(3))
    kernel = _make_conv3x3_kernel(shifts, guard, tm, M_pad // tm,
                                  use_pro, use_epi, use_res)
    scratch = ([pltpu.VMEM((tm + 2 * guard, Cin), jnp.float32)]
               if use_pro else [])
    # With the scratch fill guarded on j == 0, the Cout axis must iterate
    # sequentially per core -> "arbitrary".  The M axis stays "parallel".
    sem = ("parallel", "arbitrary") if use_pro else ("parallel", "parallel")

    out = pl.pallas_call(
        kernel,
        out_shape=jax.ShapeDtypeStruct((M_pad, Cout), jnp.bfloat16),
        grid=(M_pad // tm, Cout // tn),
        in_specs=in_specs,
        out_specs=pl.BlockSpec((tm, tn), lambda i, j: (i, j)),
        scratch_shapes=scratch,
        compiler_params=pltpu.CompilerParams(
            dimension_semantics=sem,
            vmem_limit_bytes=_VMEM_LIMIT),
    )(*args)
    return out[:M].reshape(N, Hp, Wp, Cout)[:, 1:H + 1, 1:W + 1, :]


def matmul_bias(a, w, b):
    """(M,K) @ (K,Cout) + bias; M/N/K tiled, bf16 operands, f32 accumulation."""
    M, K = a.shape
    Cout = w.shape[1]
    tm = 128 if M >= 128 else _round_up(M, 16)
    M_pad = _round_up(M, tm)
    tn = Cout if Cout <= 256 else 256
    tk = K if K <= 1152 else (1152 if K % 1152 == 0 else K)
    a_pad = jnp.pad(a, ((0, M_pad - M), (0, 0))).astype(jnp.bfloat16)
    out = pl.pallas_call(
        _matmul_bias_kernel,
        out_shape=jax.ShapeDtypeStruct((M_pad, Cout), jnp.bfloat16),
        grid=(M_pad // tm, Cout // tn, K // tk),
        in_specs=[pl.BlockSpec((tm, tk), lambda i, j, k: (i, k)),
                  pl.BlockSpec((tk, tn), lambda i, j, k: (k, j)),
                  pl.BlockSpec((1, tn), lambda i, j, k: (0, j))],
        out_specs=pl.BlockSpec((tm, tn), lambda i, j, k: (i, j)),
        scratch_shapes=[pltpu.VMEM((tm, tn), jnp.float32)],
        compiler_params=pltpu.CompilerParams(
            dimension_semantics=("parallel", "parallel", "arbitrary"),
            vmem_limit_bytes=_VMEM_LIMIT),
    )(a_pad, w, b.reshape(1, Cout))
    return out[:M]


def extract_patches(x, kh, kw, stride, padding):
    """im2col glue (used only for the strided / 1x1 convs); keeps bf16."""
    xp = jnp.pad(x, ((0, 0), (padding, padding), (padding, padding), (0, 0)))
    _, Hp, Wp, _ = xp.shape
    Ho = (Hp - kh) // stride + 1
    Wo = (Wp - kw) // stride + 1
    cols = []
    for i in range(kh):
        for j in range(kw):
            cols.append(xp[:, i:i + Ho * stride:stride,
                           j:j + Wo * stride:stride, :])
    return jnp.concatenate(cols, axis=-1)


def conv_im2col(x, w_taps, cbias, kh, kw, stride, padding):
    N, H, W, Cin = x.shape
    Cout = w_taps.shape[-1]
    patches = extract_patches(x.astype(jnp.bfloat16), kh, kw, stride, padding)
    _, Ho, Wo, K = patches.shape
    a = patches.reshape(N * Ho * Wo, K)
    wmat = w_taps.reshape(kh * kw * Cin, Cout)              # bf16
    out = matmul_bias(a, wmat, cbias)
    return out.reshape(N, Ho, Wo, Cout)


def bn_relu(x, bn):
    N, H, W, C = x.shape
    M = N * H * W
    tm = 128
    M_pad = _round_up(M, tm)
    xf = jnp.pad(x.astype(jnp.bfloat16).reshape(M, C), ((0, M_pad - M), (0, 0)))
    out = pl.pallas_call(
        _bn_relu_kernel,
        out_shape=jax.ShapeDtypeStruct((M_pad, C), jnp.bfloat16),
        grid=(M_pad // tm,),
        in_specs=[pl.BlockSpec((tm, C), lambda i: (i, 0)),
                  pl.BlockSpec((1, C), lambda i: (0, 0)),
                  pl.BlockSpec((1, C), lambda i: (0, 0))],
        out_specs=pl.BlockSpec((tm, C), lambda i: (i, 0)),
        compiler_params=pltpu.CompilerParams(
            dimension_semantics=("parallel",),
            vmem_limit_bytes=_VMEM_LIMIT),
    )(xf, bn["scale"].reshape(1, C), bn["bias"].reshape(1, C))
    return out[:M].reshape(N, H, W, C)


def pool_linear(x, wl, bl):
    """x: (N, H*W, C) bf16; wl: (C, num_classes) f32; bl: (num_classes,) f32."""
    N, HW, C = x.shape
    NC = wl.shape[1]
    return pl.pallas_call(
        _pool_linear_kernel,
        out_shape=jax.ShapeDtypeStruct((N, NC), jnp.float32),
        grid=(1,),
        in_specs=[pl.BlockSpec((N, HW, C), lambda i: (0, 0, 0)),
                  pl.BlockSpec((C, NC), lambda i: (0, 0)),
                  pl.BlockSpec((1, NC), lambda i: (0, 0))],
        out_specs=pl.BlockSpec((N, NC), lambda i: (0, 0)),
        compiler_params=pltpu.CompilerParams(vmem_limit_bytes=_VMEM_LIMIT),
    )(x, wl, bl.reshape(1, NC))


# --------------------------- parameters (synthetic) --------------------------

def conv_params(key, cin, cout, k, cin_pad=None):
    kw_, kb = jax.random.split(key)
    fan_in = cin * k * k
    w = jax.random.normal(kw_, (cout, cin, k, k), jnp.float32) * (2.0 / fan_in) ** 0.5
    # round-trip through bf16 so kernels and reference share identical weights
    w = w.astype(jnp.bfloat16).astype(jnp.float32)
    b = jax.random.normal(kb, (cout,), jnp.float32) * 0.01
    # pre-transpose once: tap-major (KH*KW, Cin, Cout) bf16 tiles for the MXU
    taps = jnp.transpose(w, (2, 3, 1, 0)).reshape(k * k, cin, cout)
    if cin_pad is not None and cin_pad > cin:
        taps = jnp.pad(taps, ((0, 0), (0, cin_pad - cin), (0, 0)))
    return {"w": w, "b": b, "w_taps": taps.astype(jnp.bfloat16)}


def bn_params(key, c):
    k1, k2, k3, k4 = jax.random.split(key, 4)
    gamma = 1.0 + 0.1 * jax.random.normal(k1, (c,), jnp.float32)
    beta = 0.1 * jax.random.normal(k2, (c,), jnp.float32)
    mean = 0.1 * jax.random.normal(k3, (c,), jnp.float32)
    var = 1.0 + 0.1 * jnp.abs(jax.random.normal(k4, (c,), jnp.float32))
    scale = gamma / jnp.sqrt(var + 1e-5)
    bias = beta - mean * scale
    return {"scale": scale, "bias": bias}


def make_block_params(key, cin, cout, stride):
    keys = jax.random.split(key, 5)
    p = {"stride": stride,
         "bn1": bn_params(keys[0], cin),
         "conv1": conv_params(keys[1], cin, cout, 3),
         "bn2": bn_params(keys[2], cout),
         "conv2": conv_params(keys[3], cout, cout, 3)}
    if stride != 1 or cin != cout:            # PreActBasic.expansion == 1
        p["shortcut"] = conv_params(keys[4], cin, cout, 1)
    return p


def make_params(key, num_block=(1, 1, 1, 1), num_classes=10):
    keys = jax.random.split(key, 8)
    params = {"pre_conv": conv_params(keys[0], 3, 64, 3, cin_pad=8),
              "pre_bn": bn_params(keys[1], 64)}
    in_ch = 64
    stage_cfg = [(64, 1), (128, 2), (256, 2), (512, 2)]
    for si, ((out_ch, stride), nb) in enumerate(zip(stage_cfg, num_block)):
        bkeys = jax.random.split(keys[2 + si], nb)
        blocks = []
        for bi in range(nb):
            s = stride if bi == 0 else 1
            blocks.append(make_block_params(bkeys[bi], in_ch, out_ch, s))
            in_ch = out_ch
        params[f"stage{si + 1}"] = blocks
    lk1, lk2 = jax.random.split(keys[6])
    params["linear_w"] = (jax.random.normal(lk1, (in_ch, num_classes), jnp.float32)
                          * (1.0 / in_ch) ** 0.5)
    params["linear_b"] = jax.random.normal(lk2, (num_classes,), jnp.float32) * 0.01
    return params


# ------------------------------- forward pass --------------------------------

def block_forward(p, x):
    stride = p["stride"]
    if "shortcut" in p:
        sc = conv_im2col(x, p["shortcut"]["w_taps"], p["shortcut"]["b"],
                         kh=1, kw=1, stride=stride, padding=0)
    else:
        sc = x
    if stride == 1:
        # BN1 + ReLU fused as the conv1 prologue
        y = conv3x3_s1(x, p["conv1"]["w_taps"], p["conv1"]["b"],
                       pro_scale=p["bn1"]["scale"], pro_bias=p["bn1"]["bias"])
    else:
        y = bn_relu(x, p["bn1"])
        y = conv_im2col(y, p["conv1"]["w_taps"], p["conv1"]["b"],
                        kh=3, kw=3, stride=stride, padding=1)
    # BN2 + ReLU fused as prologue, residual add fused as epilogue
    y = conv3x3_s1(y, p["conv2"]["w_taps"], p["conv2"]["b"],
                   pro_scale=p["bn2"]["scale"], pro_bias=p["bn2"]["bias"],
                   residual=sc)
    return y


def preact_resnet_forward(params, x_nchw):
    x = jnp.transpose(x_nchw, (0, 2, 3, 1)).astype(jnp.bfloat16)     # NCHW -> NHWC
    cin_store = params["pre_conv"]["w_taps"].shape[1]
    if cin_store > x.shape[-1]:
        x = jnp.pad(x, ((0, 0), (0, 0), (0, 0), (0, cin_store - x.shape[-1])))
    # pre conv with pre-BN + ReLU fused as the epilogue
    x = conv3x3_s1(x, params["pre_conv"]["w_taps"], params["pre_conv"]["b"],
                   epi_scale=params["pre_bn"]["scale"],
                   epi_bias=params["pre_bn"]["bias"])
    for s in ("stage1", "stage2", "stage3", "stage4"):
        for p in params[s]:
            x = block_forward(p, x)
    N, H, W, C = x.shape
    return pool_linear(x.reshape(N, H * W, C),
                       params["linear_w"], params["linear_b"])


# --------------------------- pure-JAX reference -------------------------------

def _ref_conv2d(x, w, b, stride, padding):
    out = jax.lax.conv_general_dilated(
        x, w, window_strides=(stride, stride),
        padding=[(padding, padding), (padding, padding)],
        dimension_numbers=("NHWC", "OIHW", "NHWC"),
        precision=jax.lax.Precision.HIGHEST)
    return out + b.reshape(1, 1, 1, -1)


def _ref_bn_relu(x, bn):
    return jnp.maximum(x * bn["scale"] + bn["bias"], 0.0)


def _ref_block(p, x):
    if "shortcut" in p:
        sc = _ref_conv2d(x, p["shortcut"]["w"], p["shortcut"]["b"], p["stride"], 0)
    else:
        sc = x
    y = _ref_bn_relu(x, p["bn1"])
    y = _ref_conv2d(y, p["conv1"]["w"], p["conv1"]["b"], p["stride"], 1)
    y = _ref_bn_relu(y, p["bn2"])
    y = _ref_conv2d(y, p["conv2"]["w"], p["conv2"]["b"], 1, 1)
    return y + sc


def ref_forward(params, x_nchw):
    x = jnp.transpose(x_nchw, (0, 2, 3, 1)).astype(jnp.float32)
    x = _ref_conv2d(x, params["pre_conv"]["w"], params["pre_conv"]["b"], 1, 1)
    x = _ref_bn_relu(x, params["pre_bn"])
    for s in ("stage1", "stage2", "stage3", "stage4"):
        for p in params[s]:
            x = _ref_block(p, x)
    pooled = jnp.mean(x, axis=(1, 2))
    return (jnp.dot(pooled, params["linear_w"],
                    precision=jax.lax.Precision.HIGHEST) + params["linear_b"])


# ------------------------------------ main ------------------------------------

if __name__ == "__main__":
    key = jax.random.PRNGKey(0)
    pkey, xkey = jax.random.split(key)
    # PreActResNet(PreActBasic, [1, 1, 1, 1], num_classes=10) -- small config
    params = make_params(pkey, num_block=(1, 1, 1, 1), num_classes=10)
    x = jax.random.normal(xkey, (2, 3, 16, 16), jnp.float32)        # NCHW

    out = preact_resnet_forward(params, x)
    out = jax.block_until_ready(out)

    assert out.shape == (2, 10)
    assert bool(jnp.all(jnp.isfinite(out)))

    ref = ref_forward(params, x)
    err = float(jnp.max(jnp.abs(out - ref)))
    scale = max(1.0, float(jnp.max(jnp.abs(ref))))
    assert err <= 0.1 * scale, f"mismatch: err={err}, scale={scale}"

    print("KERNEL_OK")
</pallas_src>

<mosaic_0001>
module attributes {stable_mosaic.version = 11 : i64} {
  func.func @kernel(%arg0: i32, %arg1: i32, %arg2: memref<816x8xf32, #tpu.memory_space<vmem>>, %arg3: memref<9x8x64xbf16, #tpu.memory_space<vmem>>, %arg4: memref<1x64xf32, #tpu.memory_space<vmem>>, %arg5: memref<1x64xf32, #tpu.memory_space<vmem>>, %arg6: memref<1x64xf32, #tpu.memory_space<vmem>>, %arg7: memref<128x64xbf16, #tpu.memory_space<vmem>>) attributes {dimension_semantics = [#tpu.dimension_semantics<parallel>, #tpu.dimension_semantics<parallel>], iteration_bounds = array<i64: 6, 1>, scalar_prefetch = 0 : i64, scratch_operands = 0 : i64, tpu.core_type = #tpu.core_type<tc>, window_params = [{pipeline_mode = #tpu.pipeline_mode<synchronous>, transform_indices = @transform_0, window_bounds = array<i64: 816, 8>}, {transform_indices = @transform_1, window_bounds = array<i64: 9, 8, 64>}, {transform_indices = @transform_2, window_bounds = array<i64: 1, 64>}, {transform_indices = @transform_3, window_bounds = array<i64: 1, 64>}, {transform_indices = @transform_4, window_bounds = array<i64: 1, 64>}, {transform_indices = @transform_5, window_bounds = array<i64: 128, 64>}]} {
    %c128_i32 = arith.constant 128 : i32
    %0 = arith.muli %arg0, %c128_i32 : i32
    %1 = tpu.assume_multiple %0, 128 : i32
    %cst = arith.constant 0.000000e+00 : f32
    %2 = vector.broadcast %cst : f32 to vector<128x64xf32>
    %c5_i32 = arith.constant 5 : i32
    %3 = arith.addi %1, %c5_i32 : i32
    %4 = arith.index_cast %3 : i32 to index
    %c0 = arith.constant 0 : index
    %5 = vector.load %arg2[%4, %c0] : memref<816x8xf32, #tpu.memory_space<vmem>>, vector<128x8xf32>
    %6 = arith.truncf %5 : vector<128x8xf32> to vector<128x8xbf16>
    %c0_0 = arith.constant 0 : index
    %c0_1 = arith.constant 0 : index
    %c0_2 = arith.constant 0 : index
    %7 = vector.load %arg3[%c0_0, %c0_1, %c0_2] : memref<9x8x64xbf16, #tpu.memory_space<vmem>>, vector<1x8x64xbf16>
    %8 = vector.shape_cast %7 : vector<1x8x64xbf16> to vector<8x64xbf16>
    %cst_3 = arith.constant dense<0.000000e+00> : vector<128x64xf32>
    %9 = tpu.matmul %6, %8, %cst_3 {dimension_numbers = #tpu.dot_dimension_numbers<[1], [0], [0], [1], [0, 0, 1, 1], [], []>} : vector<128x8xbf16>, vector<8x64xbf16>, vector<128x64xf32> -> vector<128x64xf32>
    %10 = arith.addf %2, %9 : vector<128x64xf32>
    %c6_i32 = arith.constant 6 : i32
    %11 = arith.addi %1, %c6_i32 : i32
    %12 = arith.index_cast %11 : i32 to index
    %c0_4 = arith.constant 0 : index
    %13 = vector.load %arg2[%12, %c0_4] : memref<816x8xf32, #tpu.memory_space<vmem>>, vector<128x8xf32>
    %14 = arith.truncf %13 : vector<128x8xf32> to vector<128x8xbf16>
    %c1 = arith.constant 1 : index
    %c0_5 = arith.constant 0 : index
    %c0_6 = arith.constant 0 : index
    %15 = vector.load %arg3[%c1, %c0_5, %c0_6] : memref<9x8x64xbf16, #tpu.memory_space<vmem>>, vector<1x8x64xbf16>
    %16 = vector.shape_cast %15 : vector<1x8x64xbf16> to vector<8x64xbf16>
    %cst_7 = arith.constant dense<0.000000e+00> : vector<128x64xf32>
    %17 = tpu.matmul %14, %16, %cst_7 {dimension_numbers = #tpu.dot_dimension_numbers<[1], [0], [0], [1], [0, 0, 1, 1], [], []>} : vector<128x8xbf16>, vector<8x64xbf16>, vector<128x64xf32> -> vector<128x64xf32>
    %18 = arith.addf %10, %17 : vector<128x64xf32>
    %c7_i32 = arith.constant 7 : i32
    %19 = arith.addi %1, %c7_i32 : i32
    %20 = arith.index_cast %19 : i32 to index
    %c0_8 = arith.constant 0 : index
    %21 = vector.load %arg2[%20, %c0_8] : memref<816x8xf32, #tpu.memory_space<vmem>>, vector<128x8xf32>
    %22 = arith.truncf %21 : vector<128x8xf32> to vector<128x8xbf16>
    %c2 = arith.constant 2 : index
    %c0_9 = arith.constant 0 : index
    %c0_10 = arith.constant 0 : index
    %23 = vector.load %arg3[%c2, %c0_9, %c0_10] : memref<9x8x64xbf16, #tpu.memory_space<vmem>>, vector<1x8x64xbf16>
    %24 = vector.shape_cast %23 : vector<1x8x64xbf16> to vector<8x64xbf16>
    %cst_11 = arith.constant dense<0.000000e+00> : vector<128x64xf32>
    %25 = tpu.matmul %22, %24, %cst_11 {dimension_numbers = #tpu.dot_dimension_numbers<[1], [0], [0], [1], [0, 0, 1, 1], [], []>} : vector<128x8xbf16>, vector<8x64xbf16>, vector<128x64xf32> -> vector<128x64xf32>
    %26 = arith.addf %18, %25 : vector<128x64xf32>
    %c23_i32 = arith.constant 23 : i32
    %27 = arith.addi %1, %c23_i32 : i32
    %28 = arith.index_cast %27 : i32 to index
    %c0_12 = arith.constant 0 : index
    %29 = vector.load %arg2[%28, %c0_12] : memref<816x8xf32, #tpu.memory_space<vmem>>, vector<128x8xf32>
    %30 = arith.truncf %29 : vector<128x8xf32> to vector<128x8xbf16>
    %c3 = arith.constant 3 : index
    %c0_13 = arith.constant 0 : index
    %c0_14 = arith.constant 0 : index
    %31 = vector.load %arg3[%c3, %c0_13, %c0_14] : memref<9x8x64xbf16, #tpu.memory_space<vmem>>, vector<1x8x64xbf16>
    %32 = vector.shape_cast %31 : vector<1x8x64xbf16> to vector<8x64xbf16>
    %cst_15 = arith.constant dense<0.000000e+00> : vector<128x64xf32>
    %33 = tpu.matmul %30, %32, %cst_15 {dimension_numbers = #tpu.dot_dimension_numbers<[1], [0], [0], [1], [0, 0, 1, 1], [], []>} : vector<128x8xbf16>, vector<8x64xbf16>, vector<128x64xf32> -> vector<128x64xf32>
    %34 = arith.addf %26, %33 : vector<128x64xf32>
    %c24_i32 = arith.constant 24 : i32
    %35 = arith.addi %1, %c24_i32 : i32
    %36 = arith.index_cast %35 : i32 to index
    %c0_16 = arith.constant 0 : index
    %37 = vector.load %arg2[%36, %c0_16] : memref<816x8xf32, #tpu.memory_space<vmem>>, vector<128x8xf32>
    %38 = arith.truncf %37 : vector<128x8xf32> to vector<128x8xbf16>
    %c4 = arith.constant 4 : index
    %c0_17 = arith.constant 0 : index
    %c0_18 = arith.constant 0 : index
    %39 = vector.load %arg3[%c4, %c0_17, %c0_18] : memref<9x8x64xbf16, #tpu.memory_space<vmem>>, vector<1x8x64xbf16>
    %40 = vector.shape_cast %39 : vector<1x8x64xbf16> to vector<8x64xbf16>
    %cst_19 = arith.constant dense<0.000000e+00> : vector<128x64xf32>
    %41 = tpu.matmul %38, %40, %cst_19 {dimension_numbers = #tpu.dot_dimension_numbers<[1], [0], [0], [1], [0, 0, 1, 1], [], []>} : vector<128x8xbf16>, vector<8x64xbf16>, vector<128x64xf32> -> vector<128x64xf32>
    %42 = arith.addf %34, %41 : vector<128x64xf32>
    %c25_i32 = arith.constant 25 : i32
    %43 = arith.addi %1, %c25_i32 : i32
    %44 = arith.index_cast %43 : i32 to index
    %c0_20 = arith.constant 0 : index
    %45 = vector.load %arg2[%44, %c0_20] : memref<816x8xf32, #tpu.memory_space<vmem>>, vector<128x8xf32>
    %46 = arith.truncf %45 : vector<128x8xf32> to vector<128x8xbf16>
    %c5 = arith.constant 5 : index
    %c0_21 = arith.constant 0 : index
    %c0_22 = arith.constant 0 : index
    %47 = vector.load %arg3[%c5, %c0_21, %c0_22] : memref<9x8x64xbf16, #tpu.memory_space<vmem>>, vector<1x8x64xbf16>
    %48 = vector.shape_cast %47 : vector<1x8x64xbf16> to vector<8x64xbf16>
    %cst_23 = arith.constant dense<0.000000e+00> : vector<128x64xf32>
    %49 = tpu.matmul %46, %48, %cst_23 {dimension_numbers = #tpu.dot_dimension_numbers<[1], [0], [0], [1], [0, 0, 1, 1], [], []>} : vector<128x8xbf16>, vector<8x64xbf16>, vector<128x64xf32> -> vector<128x64xf32>
    %50 = arith.addf %42, %49 : vector<128x64xf32>
    %c41_i32 = arith.constant 41 : i32
    %51 = arith.addi %1, %c41_i32 : i32
    %52 = arith.index_cast %51 : i32 to index
    %c0_24 = arith.constant 0 : index
    %53 = vector.load %arg2[%52, %c0_24] : memref<816x8xf32, #tpu.memory_space<vmem>>, vector<128x8xf32>
    %54 = arith.truncf %53 : vector<128x8xf32> to vector<128x8xbf16>
    %c6 = arith.constant 6 : index
    %c0_25 = arith.constant 0 : index
    %c0_26 = arith.constant 0 : index
    %55 = vector.load %arg3[%c6, %c0_25, %c0_26] : memref<9x8x64xbf16, #tpu.memory_space<vmem>>, vector<1x8x64xbf16>
    %56 = vector.shape_cast %55 : vector<1x8x64xbf16> to vector<8x64xbf16>
    %cst_27 = arith.constant dense<0.000000e+00> : vector<128x64xf32>
    %57 = tpu.matmul %54, %56, %cst_27 {dimension_numbers = #tpu.dot_dimension_numbers<[1], [0], [0], [1], [0, 0, 1, 1], [], []>} : vector<128x8xbf16>, vector<8x64xbf16>, vector<128x64xf32> -> vector<128x64xf32>
    %58 = arith.addf %50, %57 : vector<128x64xf32>
    %c42_i32 = arith.constant 42 : i32
    %59 = arith.addi %1, %c42_i32 : i32
    %60 = arith.index_cast %59 : i32 to index
    %c0_28 = arith.constant 0 : index
    %61 = vector.load %arg2[%60, %c0_28] : memref<816x8xf32, #tpu.memory_space<vmem>>, vector<128x8xf32>
    %62 = arith.truncf %61 : vector<128x8xf32> to vector<128x8xbf16>
    %c7 = arith.constant 7 : index
    %c0_29 = arith.constant 0 : index
    %c0_30 = arith.constant 0 : index
    %63 = vector.load %arg3[%c7, %c0_29, %c0_30] : memref<9x8x64xbf16, #tpu.memory_space<vmem>>, vector<1x8x64xbf16>
    %64 = vector.shape_cast %63 : vector<1x8x64xbf16> to vector<8x64xbf16>
    %cst_31 = arith.constant dense<0.000000e+00> : vector<128x64xf32>
    %65 = tpu.matmul %62, %64, %cst_31 {dimension_numbers = #tpu.dot_dimension_numbers<[1], [0], [0], [1], [0, 0, 1, 1], [], []>} : vector<128x8xbf16>, vector<8x64xbf16>, vector<128x64xf32> -> vector<128x64xf32>
    %66 = arith.addf %58, %65 : vector<128x64xf32>
    %c43_i32 = arith.constant 43 : i32
    %67 = arith.addi %1, %c43_i32 : i32
    %68 = arith.index_cast %67 : i32 to index
    %c0_32 = arith.constant 0 : index
    %69 = vector.load %arg2[%68, %c0_32] : memref<816x8xf32, #tpu.memory_space<vmem>>, vector<128x8xf32>
    %70 = arith.truncf %69 : vector<128x8xf32> to vector<128x8xbf16>
    %c8 = arith.constant 8 : index
    %c0_33 = arith.constant 0 : index
    %c0_34 = arith.constant 0 : index
    %71 = vector.load %arg3[%c8, %c0_33, %c0_34] : memref<9x8x64xbf16, #tpu.memory_space<vmem>>, vector<1x8x64xbf16>
    %72 = vector.shape_cast %71 : vector<1x8x64xbf16> to vector<8x64xbf16>
    %cst_35 = arith.constant dense<0.000000e+00> : vector<128x64xf32>
    %73 = tpu.matmul %70, %72, %cst_35 {dimension_numbers = #tpu.dot_dimension_numbers<[1], [0], [0], [1], [0, 0, 1, 1], [], []>} : vector<128x8xbf16>, vector<8x64xbf16>, vector<128x64xf32> -> vector<128x64xf32>
    %74 = arith.addf %66, %73 : vector<128x64xf32>
    %c0_36 = arith.constant 0 : index
    %c0_37 = arith.constant 0 : index
    %75 = vector.load %arg4[%c0_36, %c0_37] : memref<1x64xf32, #tpu.memory_space<vmem>>, vector<1x64xf32>
    %76 = vector.broadcast %75 : vector<1x64xf32> to vector<128x64xf32>
    %77 = arith.addf %74, %76 : vector<128x64xf32>
    %c0_38 = arith.constant 0 : index
    %c0_39 = arith.constant 0 : index
    %78 = vector.load %arg5[%c0_38, %c0_39] : memref<1x64xf32, #tpu.memory_space<vmem>>, vector<1x64xf32>
    %79 = vector.broadcast %78 : vector<1x64xf32> to vector<128x64xf32>
    %80 = arith.mulf %77, %79 : vector<128x64xf32>
    %c0_40 = arith.constant 0 : index
    %c0_41 = arith.constant 0 : index
    %81 = vector.load %arg6[%c0_40, %c0_41] : memref<1x64xf32, #tpu.memory_space<vmem>>, vector<1x64xf32>
    %82 = vector.broadcast %81 : vector<1x64xf32> to vector<128x64xf32>
    %83 = arith.addf %80, %82 : vector<128x64xf32>
    %cst_42 = arith.constant 0.000000e+00 : f32
    %84 = vector.broadcast %cst_42 : f32 to vector<128x64xf32>
    %85 = arith.maximumf %83, %84 : vector<128x64xf32>
    %86 = arith.truncf %85 : vector<128x64xf32> to vector<128x64xbf16>
    %c0_43 = arith.constant 0 : index
    %c0_44 = arith.constant 0 : index
    %87 = vector.load %arg7[%c0_43, %c0_44] : memref<128x64xbf16, #tpu.memory_space<vmem>>, vector<128x64xbf16>
    tpu.vector_store %arg7[%c0_43, %c0_44], %86 {strides = array<i32>} : memref<128x64xbf16, #tpu.memory_space<vmem>>, vector<128x64xbf16>,
    return
  }
  func.func @transform_0(%arg0: i32, %arg1: i32) -> (i32, i32) {
    %c0_i32 = arith.constant 0 : i32
    %c0_i32_0 = arith.constant 0 : i32
    %c0_i32_1 = arith.constant 0 : i32
    return %c0_i32, %c0_i32_0 : i32, i32
  }
  func.func @transform_1(%arg0: i32, %arg1: i32) -> (i32, i32, i32) {
    %c0_i32 = arith.constant 0 : i32
    %c0_i32_0 = arith.constant 0 : i32
    %c0_i32_1 = arith.constant 0 : i32
    return %c0_i32, %c0_i32_0, %arg1 : i32, i32, i32
  }
  func.func @transform_2(%arg0: i32, %arg1: i32) -> (i32, i32) {
    %c0_i32 = arith.constant 0 : i32
    %c0_i32_0 = arith.constant 0 : i32
    return %c0_i32, %arg1 : i32, i32
  }
  func.func @transform_3(%arg0: i32, %arg1: i32) -> (i32, i32) {
    %c0_i32 = arith.constant 0 : i32
    %c0_i32_0 = arith.constant 0 : i32
    return %c0_i32, %arg1 : i32, i32
  }
  func.func @transform_4(%arg0: i32, %arg1: i32) -> (i32, i32) {
    %c0_i32 = arith.constant 0 : i32
    %c0_i32_0 = arith.constant 0 : i32
    return %c0_i32, %arg1 : i32, i32
  }
  func.func @transform_5(%arg0: i32, %arg1: i32) -> (i32, i32) {
    %c0_i32 = arith.constant 0 : i32
    return %arg0, %arg1 : i32, i32
  }
}

</mosaic_0001>

<llo_original>
// kernel: tpu_custom_call.1
$region0: #{tpu_custom_call.1}
  #allocation0 [shape = 'u32[]', space=smem, size = 0x4, offset = 0x4, fixed_abs, tag = 'smem constant byte address 0x4 - core index']
  #allocation1 [shape = 'u32[144,128]{1,0:T(1,128)}', space=vmem, size = 0x12000, scoped, tag = 'internal scratch']
  %s0 = inlined_call_operand.vmem [shape: f32[816,8], index: 0, kind: input, shape index: {}]
  %s1 = inlined_call_operand.vmem [shape: bf16[9,8,64], index: 1, kind: input, shape index: {}]
  %s2 = inlined_call_operand.vmem [shape: f32[1,64], index: 2, kind: input, shape index: {}]
  %s3 = inlined_call_operand.vmem [shape: f32[1,64], index: 3, kind: input, shape index: {}]
  %s4 = inlined_call_operand.vmem [shape: f32[1,64], index: 4, kind: input, shape index: {}]
  %s5 = inlined_call_operand.vmem [shape: bf16[768,64], index: 5, kind: output, shape index: {}]
  %s6 = sld [smem:[#allocation0]]
  $region53: #{tpu_custom_call.1} parent=0
    _
  %s8 = ssub.s32 1, %s6
  %s9 = scalar_select 0, %s8, %s6
  loop: start=0, step=1, limit=8
  $region2: #{tpu_custom_call.1} parent=0 // loop_pre_header
    _
  $region3: #{tpu_custom_call.1} parent=0 // loop_header
    %s11 = sphi 0, %s15
    %p12 = scmp.ge.s32.totalorder %s11, 8
    %s18 = sphi 0, %s30
    %s19 = sphi 0, %s26
    %s20 = sphi 0, %s18
    %s21 = sphi 0, %s19
    %s22 = sphi 0, %s20
    %s23 = sphi 0, %s21
    %s31 = sphi 0, %s31
    %s33 = sphi 0, %s31
    %s34 = sphi 0, %s33
    %s48 = sphi 0, %s34
    %s54 = sphi 0, %s56
    %s57 = sphi 0, %s54
    %s58 = sphi 0, %s57
    %s74 = sphi 0, %s58
    %s80 = sphi 0, %s82
    %s83 = sphi 0, %s80
    %s84 = sphi 0, %s83
    %s100 = sphi 0, %s84
    %s106 = sphi 0, %s108
    %s109 = sphi 0, %s106
    %s110 = sphi 0, %s109
    %s126 = sphi 0, %s110
    %s132 = sphi 0, %s134
    %s135 = sphi 0, %s132
    %s136 = sphi 0, %s135
    %s152 = sphi 0, %s136
    %s160 = sphi 0, %s162
    %s163 = sphi 0, %s160
    %s164 = sphi 0, %s163
    %s180 = sphi 0, %s164
  $region4: #{tpu_custom_call.1} parent=0 // loop_header_branch
    %14 = sbr.rel (%p12) target = $region8
  $region5: #{tpu_custom_call.1} parent=0 // loop_body
    %s16 = ssub.s32 %s11, 1
    %s17 = ssub.s32 %s11, 2
    %s24 = sadd.s32 1, %s19
    %p25 = scmp.ge.s32.totalorder %s24, 1
    %s26 = scalar_select %p25, 0, %s24
    %s27 = sadd.s32 1, %s18
    %s28 = scalar_select %p25, %s27, %s18
    %p29 = scmp.ge.s32.totalorder %s28, 6
    %s30 = scalar_select %p29, 0, %s28
    %s32 = sadd.s32 %s31, 1
    %p35 = scmp.eq.s32.totalorder %s11, 5
    %p36 = scmp.ne.s32.totalorder %s31, %s33
    %p37 = scmp.eq.s32.totalorder %s11, 0
    %p38 = por %p36, %p37
    %p39 = scmp.ne.s32.totalorder %s31, %s33
    %p40 = scmp.eq.s32.totalorder %s16, 5
    %p41 = por %p39, %p40
    %p42 = scmp.ne.s32.totalorder %s33, %s34
    %p43 = scmp.eq.s32.totalorder %s16, 0
    %p44 = por %p42, %p43
    %p45 = scmp.ne.s32.totalorder %s33, %s34
    %p46 = scmp.eq.s32.totalorder %s17, 5
    %p47 = por %p45, %p46
    %p49 = scmp.ne.s32.totalorder %s34, %s48
    %p50 = scmp.eq.s32.totalorder %s17, 0
    %p51 = por %p49, %p50
    %s52 = ssub.s32 %s19, %s26
    %p53 = scmp.eq.s32.totalorder %s52, 0
    %s55 = sadd.s32 %s54, 1
    %s56 = scalar_select %p53, %s54, %s55
    %p59 = pneg %p53
    %p60 = scmp.eq.s32.totalorder %s11, 5
    %p61 = por %p59, %p60
    %p62 = scmp.ne.s32.totalorder %s54, %s57
    %p63 = scmp.eq.s32.totalorder %s11, 0
    %p64 = por %p62, %p63
    %p65 = scmp.ne.s32.totalorder %s54, %s57
    %p66 = scmp.eq.s32.totalorder %s16, 5
    %p67 = por %p65, %p66
    %p68 = scmp.ne.s32.totalorder %s57, %s58
    %p69 = scmp.eq.s32.totalorder %s16, 0
    %p70 = por %p68, %p69
    %p71 = scmp.ne.s32.totalorder %s57, %s58
    %p72 = scmp.eq.s32.totalorder %s17, 5
    %p73 = por %p71, %p72
    %p75 = scmp.ne.s32.totalorder %s58, %s74
    %p76 = scmp.eq.s32.totalorder %s17, 0
    %p77 = por %p75, %p76
    %s78 = ssub.s32 %s19, %s26
    %p79 = scmp.eq.s32.totalorder %s78, 0
    %s81 = sadd.s32 %s80, 1
    %s82 = scalar_select %p79, %s80, %s81
    %p85 = pneg %p79
    %p86 = scmp.eq.s32.totalorder %s11, 5
    %p87 = por %p85, %p86
    %p88 = scmp.ne.s32.totalorder %s80, %s83
    %p89 = scmp.eq.s32.totalorder %s11, 0
    %p90 = por %p88, %p89
    %p91 = scmp.ne.s32.totalorder %s80, %s83
    %p92 = scmp.eq.s32.totalorder %s16, 5
    %p93 = por %p91, %p92
    %p94 = scmp.ne.s32.totalorder %s83, %s84
    %p95 = scmp.eq.s32.totalorder %s16, 0
    %p96 = por %p94, %p95
    %p97 = scmp.ne.s32.totalorder %s83, %s84
    %p98 = scmp.eq.s32.totalorder %s17, 5
    %p99 = por %p97, %p98
    %p101 = scmp.ne.s32.totalorder %s84, %s100
    %p102 = scmp.eq.s32.totalorder %s17, 0
    %p103 = por %p101, %p102
    %s104 = ssub.s32 %s19, %s26
    %p105 = scmp.eq.s32.totalorder %s104, 0
    %s107 = sadd.s32 %s106, 1
    %s108 = scalar_select %p105, %s106, %s107
    %p111 = pneg %p105
    %p112 = scmp.eq.s32.totalorder %s11, 5
    %p113 = por %p111, %p112
    %p114 = scmp.ne.s32.totalorder %s106, %s109
    %p115 = scmp.eq.s32.totalorder %s11, 0
    %p116 = por %p114, %p115
    %p117 = scmp.ne.s32.totalorder %s106, %s109
    %p118 = scmp.eq.s32.totalorder %s16, 5
    %p119 = por %p117, %p118
    %p120 = scmp.ne.s32.totalorder %s109, %s110
    %p121 = scmp.eq.s32.totalorder %s16, 0
    %p122 = por %p120, %p121
    %p123 = scmp.ne.s32.totalorder %s109, %s110
    %p124 = scmp.eq.s32.totalorder %s17, 5
    %p125 = por %p123, %p124
    %p127 = scmp.ne.s32.totalorder %s110, %s126
    %p128 = scmp.eq.s32.totalorder %s17, 0
    %p129 = por %p127, %p128
    %s130 = ssub.s32 %s19, %s26
    %p131 = scmp.eq.s32.totalorder %s130, 0
    %s133 = sadd.s32 %s132, 1
    %s134 = scalar_select %p131, %s132, %s133
    %p137 = pneg %p131
    %p138 = scmp.eq.s32.totalorder %s11, 5
    %p139 = por %p137, %p138
    %p140 = scmp.ne.s32.totalorder %s132, %s135
    %p141 = scmp.eq.s32.totalorder %s11, 0
    %p142 = por %p140, %p141
    %p143 = scmp.ne.s32.totalorder %s132, %s135
    %p144 = scmp.eq.s32.totalorder %s16, 5
    %p145 = por %p143, %p144
    %p146 = scmp.ne.s32.totalorder %s135, %s136
    %p147 = scmp.eq.s32.totalorder %s16, 0
    %p148 = por %p146, %p147
    %p149 = scmp.ne.s32.totalorder %s135, %s136
    %p150 = scmp.eq.s32.totalorder %s17, 5
    %p151 = por %p149, %p150
    %p153 = scmp.ne.s32.totalorder %s136, %s152
    %p154 = scmp.eq.s32.totalorder %s17, 0
    %p155 = por %p153, %p154
    %s156 = ssub.s32 %s18, %s30
    %s157 = ssub.s32 %s19, %s26
    %s158 = sor.u32 %s156, %s157
    %p159 = scmp.eq.s32.totalorder %s158, 0
    %s161 = sadd.s32 %s160, 1
    %s162 = scalar_select %p159, %s160, %s161
    %p165 = pneg %p159
    %p166 = scmp.eq.s32.totalorder %s11, 5
    %p167 = por %p165, %p166
    %p168 = scmp.ne.s32.totalorder %s160, %s163
    %p169 = scmp.eq.s32.totalorder %s11, 0
    %p170 = por %p168, %p169
    %p171 = scmp.ne.s32.totalorder %s160, %s163
    %p172 = scmp.eq.s32.totalorder %s16, 5
    %p173 = por %p171, %p172
    %p174 = scmp.ne.s32.totalorder %s163, %s164
    %p175 = scmp.eq.s32.totalorder %s16, 0
    %p176 = por %p174, %p175
    %p177 = scmp.ne.s32.totalorder %s163, %s164
    %p178 = scmp.eq.s32.totalorder %s17, 5
    %p179 = por %p177, %p178
    %p181 = scmp.ne.s32.totalorder %s164, %s180
    %p182 = scmp.eq.s32.totalorder %s17, 0
    %p183 = por %p181, %p182
    %p184 = scmp.le.s32.totalorder 1, %s11
    %p185 = scmp.lt.s32.totalorder %s11, 7
    %p186 = pnand %p184, %p185
    %p187 = pneg %p186
    // Predicated region
    $region9: #{tpu_custom_call.1} parent=5 // pred_check
      _
    $region10: #{tpu_custom_call.1} parent=5 // pred_check_branch
      %189 = sbr.rel (%p186) target = $region12
    $region11: #{tpu_custom_call.1} parent=5 // pred_region
      %s190 = ssub.s32 %s11, 1
      // Predicated region
      $region13: #{tpu_custom_call.1} parent=11 // pred_check
        %p191 = pneg %p44
      $region14: #{tpu_custom_call.1} parent=11 // pred_check_branch
        %193 = sbr.rel (%p191) target = $region16
      $region15: #{tpu_custom_call.1} parent=11 // pred_region
        _
      $region16: #{tpu_custom_call.1} parent=11 // pred_fallthru
        _
      // Predicated region
      $region17: #{tpu_custom_call.1} parent=11 // pred_check
        %p194 = pneg %p70
      $region18: #{tpu_custom_call.1} parent=11 // pred_check_branch
        %196 = sbr.rel (%p194) target = $region20
      $region19: #{tpu_custom_call.1} parent=11 // pred_region
        %p197 = scmp.lt.s32.totalorder %s21, 0
        %s198 = scalar_select %p197, %s21, 0
        %s199 = smul.addr %s198, 4
        %s200 = scalar_lea.vmem %s1, %s199
      $region20: #{tpu_custom_call.1} parent=11 // pred_fallthru
        _
      // Predicated region
      $region21: #{tpu_custom_call.1} parent=11 // pred_check
        %p201 = pneg %p96
      $region22: #{tpu_custom_call.1} parent=11 // pred_check_branch
        %203 = sbr.rel (%p201) target = $region24
      $region23: #{tpu_custom_call.1} parent=11 // pred_region
        %p204 = scmp.lt.s32.totalorder %s21, 0
        %s205 = scalar_select %p204, %s21, 0
        %s206 = scalar_lea.vmem %s2, %s205
      $region24: #{tpu_custom_call.1} parent=11 // pred_fallthru
        _
      // Predicated region
      $region25: #{tpu_custom_call.1} parent=11 // pred_check
        %p207 = pneg %p122
      $region26: #{tpu_custom_call.1} parent=11 // pred_check_branch
        %209 = sbr.rel (%p207) target = $region28
      $region27: #{tpu_custom_call.1} parent=11 // pred_region
        %p210 = scmp.lt.s32.totalorder %s21, 0
        %s211 = scalar_select %p210, %s21, 0
        %s212 = scalar_lea.vmem %s3, %s211
      $region28: #{tpu_custom_call.1} parent=11 // pred_fallthru
        _
      // Predicated region
      $region29: #{tpu_custom_call.1} parent=11 // pred_check
        %p213 = pneg %p148
      $region30: #{tpu_custom_call.1} parent=11 // pred_check_branch
        %215 = sbr.rel (%p213) target = $region32
      $region31: #{tpu_custom_call.1} parent=11 // pred_region
        %p216 = scmp.lt.s32.totalorder %s21, 0
        %s217 = scalar_select %p216, %s21, 0
        %s218 = scalar_lea.vmem %s4, %s217
      $region32: #{tpu_custom_call.1} parent=11 // pred_fallthru
        _
    $region12: #{tpu_custom_call.1} parent=5 // pred_fallthru
      _
    %p219 = scmp.lt.s32.totalorder %s11, 6
    // Predicated region
    $region33: #{tpu_custom_call.1} parent=5 // pred_check
      %p220 = pneg %p219
    $region34: #{tpu_custom_call.1} parent=5 // pred_check_branch
      %222 = sbr.rel (%p220) target = $region36
    $region35: #{tpu_custom_call.1} parent=5 // pred_region
      _
    $region36: #{tpu_custom_call.1} parent=5 // pred_fallthru
      _
    %p223 = scmp.le.s32.totalorder 1, %s11
    %p224 = scmp.lt.s32.totalorder %s11, 7
    %p225 = pnand %p223, %p224
    %p226 = pneg %p225
    // Predicated region
    $region37: #{tpu_custom_call.1} parent=5 // pred_check
      _
    $region38: #{tpu_custom_call.1} parent=5 // pred_check_branch
      %228 = sbr.rel (%p225) target = $region40
    $region39: #{tpu_custom_call.1} parent=5 // pred_region
      %s229 = ssub.s32 %s11, 1
      %p230 = pneg %p44
      %p231 = pneg %p41
      %p232 = scmp.lt.s32.totalorder %s21, 0
      %s233 = scalar_select %p232, %s21, 0
      %s234 = smul.addr %s233, 4
      %s235 = scalar_lea.vmem %s1, %s234
      %p236 = pneg %p70
      %p237 = pneg %p67
      %p238 = scmp.lt.s32.totalorder %s21, 0
      %s239 = scalar_select %p238, %s21, 0
      %s240 = scalar_lea.vmem %s2, %s239
      %p241 = pneg %p96
      %p242 = pneg %p93
      %p243 = scmp.lt.s32.totalorder %s21, 0
      %s244 = scalar_select %p243, %s21, 0
      %s245 = scalar_lea.vmem %s3, %s244
      %p246 = pneg %p122
      %p247 = pneg %p119
      %p248 = scmp.lt.s32.totalorder %s21, 0
      %s249 = scalar_select %p248, %s21, 0
      %s250 = scalar_lea.vmem %s4, %s249
      %p251 = pneg %p148
      %p252 = pneg %p145
      %p253 = pneg %p176
      %p254 = pneg %p173
      %s255 = smul.u32 16, %s20
      %p256 = scmp.lt.s32.totalorder %s255, 95
      %s257 = scalar_select %p256, %s255, 95
      %p258 = scmp.lt.s32.totalorder %s21, 0
      %s259 = scalar_select %p258, %s21, 0
      %s260 = sadd.s32 %s259, %s257
      %s261 = smul.addr %s260, 4
      %s262 = scalar_lea.vmem %s5, %s261
      %p263 = scmp.lt.s32.totalorder %s21, 0
      %s264 = scalar_select %p263, %s21, 0
      %s265 = smul.addr %s264, 4
      %s266 = scalar_lea.vmem %s1, %s265
      %p267 = scmp.lt.s32.totalorder %s21, 0
      %s268 = scalar_select %p267, %s21, 0
      %s269 = scalar_lea.vmem %s2, %s268
      %p270 = scmp.lt.s32.totalorder %s21, 0
      %s271 = scalar_select %p270, %s21, 0
      %s272 = scalar_lea.vmem %s3, %s271
      %p273 = scmp.lt.s32.totalorder %s21, 0
      %s274 = scalar_select %p273, %s21, 0
      %s275 = scalar_lea.vmem %s4, %s274
      %s276 = smul.u32 16, %s20
      %p277 = scmp.lt.s32.totalorder %s276, 95
      %s278 = scalar_select %p277, %s276, 95
      %p279 = scmp.lt.s32.totalorder %s21, 0
      %s280 = scalar_select %p279, %s21, 0
      %s281 = sadd.s32 %s280, %s278
      %s282 = smul.addr %s281, 4
      %s283 = scalar_lea.vmem %s5, %s282
      %s284 = smul.u32 16, %s20
      %s286 = smul.u32 %s20, 128
      %s287 = sadd.s32 %s286, 5
      %s288 = scalar_lea.vmem %s0, %s287
      %v289 = vld [vmem:[%s288] sm:$0xff]
      %v290 = vld [vmem:[%s288 + $0x8] sm:$0xff]
      %v291 = vld [vmem:[%s288 + $0x10] sm:$0xff]
      %v292 = vld [vmem:[%s288 + $0x18] sm:$0xff]
      %v293 = vld [vmem:[%s288 + $0x20] sm:$0xff]
      %v294 = vld [vmem:[%s288 + $0x28] sm:$0xff]
      %v295 = vld [vmem:[%s288 + $0x30] sm:$0xff]
      %v296 = vld [vmem:[%s288 + $0x38] sm:$0xff]
      %v297 = vld [vmem:[%s288 + $0x40] sm:$0xff]
      %v298 = vld [vmem:[%s288 + $0x48] sm:$0xff]
      %v299 = vld [vmem:[%s288 + $0x50] sm:$0xff]
      %v300 = vld [vmem:[%s288 + $0x58] sm:$0xff]
      %v301 = vld [vmem:[%s288 + $0x60] sm:$0xff]
      %v302 = vld [vmem:[%s288 + $0x68] sm:$0xff]
      %v303 = vld [vmem:[%s288 + $0x70] sm:$0xff]
      %v304 = vld [vmem:[%s288 + $0x78] sm:$0xff]
      %v305 = vpack.c.bf16 %v290, %v289
      %v306 = vpack.c.bf16 %v292, %v291
      %v307 = vpack.c.bf16 %v294, %v293
      %v308 = vpack.c.bf16 %v296, %v295
      %v309 = vpack.c.bf16 %v298, %v297
      %v310 = vpack.c.bf16 %v300, %v299
      %v311 = vpack.c.bf16 %v302, %v301
      %v312 = vpack.c.bf16 %v304, %v303
      %v313 = vld [vmem:[%s266] sm:$0xf]
      %s314 = sadd.s32 %s286, 6
      %s315 = scalar_lea.vmem %s0, %s314
      %v316 = vld [vmem:[%s315] sm:$0xff]
      %v317 = vld [vmem:[%s315 + $0x8] sm:$0xff]
      %v318 = vld [vmem:[%s315 + $0x10] sm:$0xff]
      %v319 = vld [vmem:[%s315 + $0x18] sm:$0xff]
      %v320 = vld [vmem:[%s315 + $0x20] sm:$0xff]
      %v321 = vld [vmem:[%s315 + $0x28] sm:$0xff]
      %v322 = vld [vmem:[%s315 + $0x30] sm:$0xff]
      %v323 = vld [vmem:[%s315 + $0x38] sm:$0xff]
      %v324 = vld [vmem:[%s315 + $0x40] sm:$0xff]
      %v325 = vld [vmem:[%s315 + $0x48] sm:$0xff]
      %v326 = vld [vmem:[%s315 + $0x50] sm:$0xff]
      %v327 = vld [vmem:[%s315 + $0x58] sm:$0xff]
      %v328 = vld [vmem:[%s315 + $0x60] sm:$0xff]
      %v329 = vld [vmem:[%s315 + $0x68] sm:$0xff]
      %v330 = vld [vmem:[%s315 + $0x70] sm:$0xff]
      %v331 = vld [vmem:[%s315 + $0x78] sm:$0xff]
      %v332 = vpack.c.bf16 %v317, %v316
      %v333 = vpack.c.bf16 %v319, %v318
      %v334 = vpack.c.bf16 %v321, %v320
      %v335 = vpack.c.bf16 %v323, %v322
      %v336 = vpack.c.bf16 %v325, %v324
      %v337 = vpack.c.bf16 %v327, %v326
      %v338 = vpack.c.bf16 %v329, %v328
      %v339 = vpack.c.bf16 %v331, %v330
      %s340 = scalar_lea.vmem %s266, 4
      %v341 = vld [vmem:[%s340] sm:$0xf]
      %vm342 = vcmask 64512
      %v344 = vsel %vm342, %v332, 0
      %v347 = vsel %vm342, %v333, 0
      %v350 = vsel %vm342, %v334, 0
      %v353 = vsel %vm342, %v335, 0
      %v356 = vsel %vm342, %v336, 0
      %v359 = vsel %vm342, %v337, 0
      %v362 = vsel %vm342, %v338, 0
      %v365 = vsel %vm342, %v339, 0
      %vm367 = vcmask 1043456
      %v369 = vsel %vm367, %v341, 0
      %371 = vmatprep.subr.bf16.mxu0 0
      %372 = vmatpush1.bf16.msra.mxu0 %v369
      %373 = vmatprep.subr.bf16.mxu0 0
      %374 = vmatpush1.bf16.msra.mxu0 0
      %375 = vmatprep.subr.bf16.mxu0 0
      %376 = vmatpush1.bf16.msra.mxu0 0
      %377 = vmatprep.subr.bf16.mxu0 0
      %378 = vmatpush1.bf16.msra.mxu0 0
      %379 = vmatprep.subr.bf16.mxu0 0
      %380 = vmatpush1.bf16.msra.mxu0 0
      %381 = vmatprep.subr.bf16.mxu0 0
      %382 = vmatpush1.bf16.msra.mxu0 0
      %383 = vmatprep.subr.bf16.mxu0 0
      %384 = vmatpush1.bf16.msra.mxu0 0
      %385 = vmatprep.subr.bf16.mxu0 0
      %386 = vmatpush1.bf16.msra.mxu0 0
      %387 = vmatprep.subr.bf16.mxu0 0
      %388 = vmatpush1.bf16.msra.mxu0 0
      %389 = vmatprep.subr.bf16.mxu0 0
      %390 = vmatpush1.bf16.msra.mxu0 0
      %391 = vmatprep.subr.bf16.mxu0 0
      %392 = vmatpush1.bf16.msra.mxu0 0
      %393 = vmatprep.subr.bf16.mxu0 0
      %394 = vmatpush1.bf16.msra.mxu0 0
      %395 = vmatprep.subr.bf16.mxu0 0
      %396 = vmatpush1.bf16.msra.mxu0 0
      %397 = vmatprep.subr.bf16.mxu0 0
      %398 = vmatpush1.bf16.msra.mxu0 0
      %399 = vmatprep.subr.bf16.mxu0 0
      %400 = vmatpush1.bf16.msra.mxu0 0
      %401 = vmatprep.subr.bf16.mxu0 0
      %402 = vmatpush1.bf16.msra.mxu0 0
      %403 = vmatprep.mubr.bf16.mxu0 0
      %404 = vmatmul.mubr.bf16.gmra.mrb[0].mxu0 %v344
      %v405 = vpop.f32.mrb[0].mxu0
      %v406 = vadd.f32 0.0, %v405
      %v407 = vpop.f32.mrb[0].mxu0
      %v408 = vpop.f32.mrb[0].mxu0
      %v409 = vadd.f32 0.0, %v408
      %v410 = vpop.f32.mrb[0].mxu0
      %411 = vmatprep.mubr.bf16.mxu0 0
      %412 = vmatmul.mubr.bf16.gmra.mrb[0].mxu0 %v347
      %v413 = vpop.f32.mrb[0].mxu0
      %v414 = vadd.f32 0.0, %v413
      %v415 = vpop.f32.mrb[0].mxu0
      %v416 = vpop.f32.mrb[0].mxu0
      %v417 = vadd.f32 0.0, %v416
      %v418 = vpop.f32.mrb[0].mxu0
      %419 = vmatprep.mubr.bf16.mxu0 0
      %420 = vmatmul.mubr.bf16.gmra.mrb[0].mxu0 %v350
      %v421 = vpop.f32.mrb[0].mxu0
      %v422 = vadd.f32 0.0, %v421
      %v423 = vpop.f32.mrb[0].mxu0
      %v424 = vpop.f32.mrb[0].mxu0
      %v425 = vadd.f32 0.0, %v424
      %v426 = vpop.f32.mrb[0].mxu0
      %427 = vmatprep.mubr.bf16.mxu0 0
      %428 = vmatmul.mubr.bf16.gmra.mrb[0].mxu0 %v353
      %v429 = vpop.f32.mrb[0].mxu0
      %v430 = vadd.f32 0.0, %v429
      %v431 = vpop.f32.mrb[0].mxu0
      %v432 = vpop.f32.mrb[0].mxu0
      %v433 = vadd.f32 0.0, %v432
      %v434 = vpop.f32.mrb[0].mxu0
      %435 = vmatprep.mubr.bf16.mxu0 0
      %436 = vmatmul.mubr.bf16.gmra.mrb[0].mxu0 %v356
      %v437 = vpop.f32.mrb[0].mxu0
      %v438 = vadd.f32 0.0, %v437
      %v439 = vpop.f32.mrb[0].mxu0
      %v440 = vpop.f32.mrb[0].mxu0
      %v441 = vadd.f32 0.0, %v440
      %v442 = vpop.f32.mrb[0].mxu0
      %443 = vmatprep.mubr.bf16.mxu0 0
      %444 = vmatmul.mubr.bf16.gmra.mrb[0].mxu0 %v359
      %v445 = vpop.f32.mrb[0].mxu0
      %v446 = vadd.f32 0.0, %v445
      %v447 = vpop.f32.mrb[0].mxu0
      %v448 = vpop.f32.mrb[0].mxu0
      %v449 = vadd.f32 0.0, %v448
      %v450 = vpop.f32.mrb[0].mxu0
      %451 = vmatprep.mubr.bf16.mxu0 0
      %452 = vmatmul.mubr.bf16.gmra.mrb[0].mxu0 %v362
      %v453 = vpop.f32.mrb[0].mxu0
      %v454 = vadd.f32 0.0, %v453
      %v455 = vpop.f32.mrb[0].mxu0
      %v456 = vpop.f32.mrb[0].mxu0
      %v457 = vadd.f32 0.0, %v456
      %v458 = vpop.f32.mrb[0].mxu0
      %459 = vmatprep.mubr.bf16.mxu0 0
      %460 = vmatmul.mubr.bf16.gmra.mrb[0].mxu0 %v365
      %v461 = vpop.f32.mrb[0].mxu0
      %v462 = vadd.f32 0.0, %v461
      %v463 = vpop.f32.mrb[0].mxu0
      %v464 = vpop.f32.mrb[0].mxu0
      %v465 = vadd.f32 0.0, %v464
      %v466 = vpop.f32.mrb[0].mxu0
      %467 = vdwg.mxu0
      %v469 = vsel %vm342, %v305, 0
      %v472 = vsel %vm342, %v306, 0
      %v475 = vsel %vm342, %v307, 0
      %v478 = vsel %vm342, %v308, 0
      %v481 = vsel %vm342, %v309, 0
      %v484 = vsel %vm342, %v310, 0
      %v487 = vsel %vm342, %v311, 0
      %v490 = vsel %vm342, %v312, 0
      %v493 = vsel %vm367, %v313, 0
      %495 = vmatprep.subr.bf16.mxu0 0
      %496 = vmatpush1.bf16.msra.mxu0 %v493
      %497 = vmatprep.subr.bf16.mxu0 0
      %498 = vmatpush1.bf16.msra.mxu0 0
      %499 = vmatprep.subr.bf16.mxu0 0
      %500 = vmatpush1.bf16.msra.mxu0 0
      %501 = vmatprep.subr.bf16.mxu0 0
      %502 = vmatpush1.bf16.msra.mxu0 0
      %503 = vmatprep.subr.bf16.mxu0 0
      %504 = vmatpush1.bf16.msra.mxu0 0
      %505 = vmatprep.subr.bf16.mxu0 0
      %506 = vmatpush1.bf16.msra.mxu0 0
      %507 = vmatprep.subr.bf16.mxu0 0
      %508 = vmatpush1.bf16.msra.mxu0 0
      %509 = vmatprep.subr.bf16.mxu0 0
      %510 = vmatpush1.bf16.msra.mxu0 0
      %511 = vmatprep.subr.bf16.mxu0 0
      %512 = vmatpush1.bf16.msra.mxu0 0
      %513 = vmatprep.subr.bf16.mxu0 0
      %514 = vmatpush1.bf16.msra.mxu0 0
      %515 = vmatprep.subr.bf16.mxu0 0
      %516 = vmatpush1.bf16.msra.mxu0 0
      %517 = vmatprep.subr.bf16.mxu0 0
      %518 = vmatpush1.bf16.msra.mxu0 0
      %519 = vmatprep.subr.bf16.mxu0 0
      %520 = vmatpush1.bf16.msra.mxu0 0
      %521 = vmatprep.subr.bf16.mxu0 0
      %522 = vmatpush1.bf16.msra.mxu0 0
      %523 = vmatprep.subr.bf16.mxu0 0
      %524 = vmatpush1.bf16.msra.mxu0 0
      %525 = vmatprep.subr.bf16.mxu0 0
      %526 = vmatpush1.bf16.msra.mxu0 0
      %527 = vmatprep.mubr.bf16.mxu0 0
      %528 = vmatmul.mubr.bf16.gmra.mrb[0].mxu0 %v469
      %v529 = vpop.f32.mrb[0].mxu0
      %v530 = vadd.f32 %v406, %v529
      %v531 = vpop.f32.mrb[0].mxu0
      %v532 = vpop.f32.mrb[0].mxu0
      %v533 = vadd.f32 %v409, %v532
      %v534 = vpop.f32.mrb[0].mxu0
      %535 = vmatprep.mubr.bf16.mxu0 0
      %536 = vmatmul.mubr.bf16.gmra.mrb[0].mxu0 %v472
      %v537 = vpop.f32.mrb[0].mxu0
      %v538 = vadd.f32 %v414, %v537
      %v539 = vpop.f32.mrb[0].mxu0
      %v540 = vpop.f32.mrb[0].mxu0
      %v541 = vadd.f32 %v417, %v540
      %v542 = vpop.f32.mrb[0].mxu0
      %543 = vmatprep.mubr.bf16.mxu0 0
      %544 = vmatmul.mubr.bf16.gmra.mrb[0].mxu0 %v475
      %v545 = vpop.f32.mrb[0].mxu0
      %v546 = vadd.f32 %v422, %v545
      %v547 = vpop.f32.mrb[0].mxu0
      %v548 = vpop.f32.mrb[0].mxu0
      %v549 = vadd.f32 %v425, %v548
      %v550 = vpop.f32.mrb[0].mxu0
      %551 = vmatprep.mubr.bf16.mxu0 0
      %552 = vmatmul.mubr.bf16.gmra.mrb[0].mxu0 %v478
      %v553 = vpop.f32.mrb[0].mxu0
      %v554 = vadd.f32 %v430, %v553
      %v555 = vpop.f32.mrb[0].mxu0
      %v556 = vpop.f32.mrb[0].mxu0
      %v557 = vadd.f32 %v433, %v556
      %v558 = vpop.f32.mrb[0].mxu0
      %559 = vmatprep.mubr.bf16.mxu0 0
      %560 = vmatmul.mubr.bf16.gmra.mrb[0].mxu0 %v481
      %v561 = vpop.f32.mrb[0].mxu0
      %v562 = vadd.f32 %v438, %v561
      %v563 = vpop.f32.mrb[0].mxu0
      %v564 = vpop.f32.mrb[0].mxu0
      %v565 = vadd.f32 %v441, %v564
      %v566 = vpop.f32.mrb[0].mxu0
      %567 = vmatprep.mubr.bf16.mxu0 0
      %568 = vmatmul.mubr.bf16.gmra.mrb[0].mxu0 %v484
      %v569 = vpop.f32.mrb[0].mxu0
      %v570 = vadd.f32 %v446, %v569
      %v571 = vpop.f32.mrb[0].mxu0
      %v572 = vpop.f32.mrb[0].mxu0
      %v573 = vadd.f32 %v449, %v572
      %v574 = vpop.f32.mrb[0].mxu0
      %575 = vmatprep.mubr.bf16.mxu0 0
      %576 = vmatmul.mubr.bf16.gmra.mrb[0].mxu0 %v487
      %v577 = vpop.f32.mrb[0].mxu0
      %v578 = vadd.f32 %v454, %v577
      %v579 = vpop.f32.mrb[0].mxu0
      %v580 = vpop.f32.mrb[0].mxu0
      %v581 = vadd.f32 %v457, %v580
      %v582 = vpop.f32.mrb[0].mxu0
      %583 = vmatprep.mubr.bf16.mxu0 0
      %584 = vmatmul.mubr.bf16.gmra.mrb[0].mxu0 %v490
      %v585 = vpop.f32.mrb[0].mxu0
      %v586 = vadd.f32 %v462, %v585
      %v587 = vpop.f32.mrb[0].mxu0
      %v588 = vpop.f32.mrb[0].mxu0
      %v589 = vadd.f32 %v465, %v588
      %v590 = vpop.f32.mrb[0].mxu0
      %591 = vdwg.mxu0
      %s592 = sadd.s32 %s286, 7
      %s593 = scalar_lea.vmem %s0, %s592
      %v594 = vld [vmem:[%s593] sm:$0xff]
      %v595 = vld [vmem:[%s593 + $0x8] sm:$0xff]
      %v596 = vld [vmem:[%s593 + $0x10] sm:$0xff]
      %v597 = vld [vmem:[%s593 + $0x18] sm:$0xff]
      %v598 = vld [vmem:[%s593 + $0x20] sm:$0xff]
      %v599 = vld [vmem:[%s593 + $0x28] sm:$0xff]
      %v600 = vld [vmem:[%s593 + $0x30] sm:$0xff]
      %v601 = vld [vmem:[%s593 + $0x38] sm:$0xff]
      %v602 = vld [vmem:[%s593 + $0x40] sm:$0xff]
      %v603 = vld [vmem:[%s593 + $0x48] sm:$0xff]
      %v604 = vld [vmem:[%s593 + $0x50] sm:$0xff]
      %v605 = vld [vmem:[%s593 + $0x58] sm:$0xff]
      %v606 = vld [vmem:[%s593 + $0x60] sm:$0xff]
      %v607 = vld [vmem:[%s593 + $0x68] sm:$0xff]
      %v608 = vld [vmem:[%s593 + $0x70] sm:$0xff]
      %v609 = vld [vmem:[%s593 + $0x78] sm:$0xff]
      %v610 = vpack.c.bf16 %v595, %v594
      %v611 = vpack.c.bf16 %v597, %v596
      %v612 = vpack.c.bf16 %v599, %v598
      %v613 = vpack.c.bf16 %v601, %v600
      %v614 = vpack.c.bf16 %v603, %v602
      %v615 = vpack.c.bf16 %v605, %v604
      %v616 = vpack.c.bf16 %v607, %v606
      %v617 = vpack.c.bf16 %v609, %v608
      %s618 = scalar_lea.vmem %s266, 8
      %v619 = vld [vmem:[%s618] sm:$0xf]
      %v621 = vsel %vm342, %v610, 0
      %v624 = vsel %vm342, %v611, 0
      %v627 = vsel %vm342, %v612, 0
      %v630 = vsel %vm342, %v613, 0
      %v633 = vsel %vm342, %v614, 0
      %v636 = vsel %vm342, %v615, 0
      %v639 = vsel %vm342, %v616, 0
      %v642 = vsel %vm342, %v617, 0
      %v645 = vsel %vm367, %v619, 0
      %647 = vmatprep.subr.bf16.mxu0 0
      %648 = vmatpush1.bf16.msra.mxu0 %v645
      %649 = vmatprep.subr.bf16.mxu0 0
      %650 = vmatpush1.bf16.msra.mxu0 0
      %651 = vmatprep.subr.bf16.mxu0 0
      %652 = vmatpush1.bf16.msra.mxu0 0
      %653 = vmatprep.subr.bf16.mxu0 0
      %654 = vmatpush1.bf16.msra.mxu0 0
      %655 = vmatprep.subr.bf16.mxu0 0
      %656 = vmatpush1.bf16.msra.mxu0 0
      %657 = vmatprep.subr.bf16.mxu0 0
      %658 = vmatpush1.bf16.msra.mxu0 0
      %659 = vmatprep.subr.bf16.mxu0 0
      %660 = vmatpush1.bf16.msra.mxu0 0
      %661 = vmatprep.subr.bf16.mxu0 0
      %662 = vmatpush1.bf16.msra.mxu0 0
      %663 = vmatprep.subr.bf16.mxu0 0
      %664 = vmatpush1.bf16.msra.mxu0 0
      %665 = vmatprep.subr.bf16.mxu0 0
      %666 = vmatpush1.bf16.msra.mxu0 0
      %667 = vmatprep.subr.bf16.mxu0 0
      %668 = vmatpush1.bf16.msra.mxu0 0
      %669 = vmatprep.subr.bf16.mxu0 0
      %670 = vmatpush1.bf16.msra.mxu0 0
      %671 = vmatprep.subr.bf16.mxu0 0
      %672 = vmatpush1.bf16.msra.mxu0 0
      %673 = vmatprep.subr.bf16.mxu0 0
      %674 = vmatpush1.bf16.msra.mxu0 0
      %675 = vmatprep.subr.bf16.mxu0 0
      %676 = vmatpush1.bf16.msra.mxu0 0
      %677 = vmatprep.subr.bf16.mxu0 0
      %678 = vmatpush1.bf16.msra.mxu0 0
      %679 = vmatprep.mubr.bf16.mxu0 0
      %680 = vmatmul.mubr.bf16.gmra.mrb[0].mxu0 %v621
      %v681 = vpop.f32.mrb[0].mxu0
      %v682 = vadd.f32 0.0, %v681
      %v683 = vpop.f32.mrb[0].mxu0
      %v684 = vpop.f32.mrb[0].mxu0
      %v685 = vadd.f32 0.0, %v684
      %v686 = vpop.f32.mrb[0].mxu0
      %687 = vmatprep.mubr.bf16.mxu0 0
      %688 = vmatmul.mubr.bf16.gmra.mrb[0].mxu0 %v624
      %v689 = vpop.f32.mrb[0].mxu0
      %v690 = vadd.f32 0.0, %v689
      %v691 = vpop.f32.mrb[0].mxu0
      %v692 = vpop.f32.mrb[0].mxu0
      %v693 = vadd.f32 0.0, %v692
      %v694 = vpop.f32.mrb[0].mxu0
      %695 = vmatprep.mubr.bf16.mxu0 0
      %696 = vmatmul.mubr.bf16.gmra.mrb[0].mxu0 %v627
      %v697 = vpop.f32.mrb[0].mxu0
      %v698 = vadd.f32 0.0, %v697
      %v699 = vpop.f32.mrb[0].mxu0
      %v700 = vpop.f32.mrb[0].mxu0
      %v701 = vadd.f32 0.0, %v700
      %v702 = vpop.f32.mrb[0].mxu0
      %703 = vmatprep.mubr.bf16.mxu0 0
      %704 = vmatmul.mubr.bf16.gmra.mrb[0].mxu0 %v630
      %v705 = vpop.f32.mrb[0].mxu0
      %v706 = vadd.f32 0.0, %v705
      %v707 = vpop.f32.mrb[0].mxu0
      %v708 = vpop.f32.mrb[0].mxu0
      %v709 = vadd.f32 0.0, %v708
      %v710 = vpop.f32.mrb[0].mxu0
      %711 = vmatprep.mubr.bf16.mxu0 0
      %712 = vmatmul.mubr.bf16.gmra.mrb[0].mxu0 %v633
      %v713 = vpop.f32.mrb[0].mxu0
      %v714 = vadd.f32 0.0, %v713
      %v715 = vpop.f32.mrb[0].mxu0
      %v716 = vpop.f32.mrb[0].mxu0
      %v717 = vadd.f32 0.0, %v716
      %v718 = vpop.f32.mrb[0].mxu0
      %719 = vmatprep.mubr.bf16.mxu0 0
      %720 = vmatmul.mubr.bf16.gmra.mrb[0].mxu0 %v636
      %v721 = vpop.f32.mrb[0].mxu0
      %v722 = vadd.f32 0.0, %v721
      %v723 = vpop.f32.mrb[0].mxu0
      %v724 = vpop.f32.mrb[0].mxu0
      %v725 = vadd.f32 0.0, %v724
      %v726 = vpop.f32.mrb[0].mxu0
      %727 = vmatprep.mubr.bf16.mxu0 0
      %728 = vmatmul.mubr.bf16.gmra.mrb[0].mxu0 %v639
      %v729 = vpop.f32.mrb[0].mxu0
      %v730 = vadd.f32 0.0, %v729
      %v731 = vpop.f32.mrb[0].mxu0
      %v732 = vpop.f32.mrb[0].mxu0
      %v733 = vadd.f32 0.0, %v732
      %v734 = vpop.f32.mrb[0].mxu0
      %735 = vmatprep.mubr.bf16.mxu0 0
      %736 = vmatmul.mubr.bf16.gmra.mrb[0].mxu0 %v642
      %v737 = vpop.f32.mrb[0].mxu0
      %v738 = vadd.f32 0.0, %v737
      %v739 = vpop.f32.mrb[0].mxu0
      %v740 = vpop.f32.mrb[0].mxu0
      %v741 = vadd.f32 0.0, %v740
      %v742 = vpop.f32.mrb[0].mxu0
      %743 = vdwg.mxu0
      %v744 = vadd.f32 %v530, %v682
      %v745 = vadd.f32 %v533, %v685
      %v746 = vadd.f32 %v538, %v690
      %v747 = vadd.f32 %v541, %v693
      %v748 = vadd.f32 %v546, %v698
      %v749 = vadd.f32 %v549, %v701
      %v750 = vadd.f32 %v554, %v706
      %v751 = vadd.f32 %v557, %v709
      %v752 = vadd.f32 %v562, %v714
      %v753 = vadd.f32 %v565, %v717
      %v754 = vadd.f32 %v570, %v722
      %v755 = vadd.f32 %v573, %v725
      %v756 = vadd.f32 %v578, %v730
      %v757 = vadd.f32 %v581, %v733
      %v758 = vadd.f32 %v586, %v738
      %v759 = vadd.f32 %v589, %v741
      %s760 = sadd.s32 %s286, 23
      %s761 = scalar_lea.vmem %s0, %s760
      %v762 = vld [vmem:[%s761] sm:$0xff]
      %v763 = vld [vmem:[%s761 + $0x8] sm:$0xff]
      %v764 = vld [vmem:[%s761 + $0x10] sm:$0xff]
      %v765 = vld [vmem:[%s761 + $0x18] sm:$0xff]
      %v766 = vld [vmem:[%s761 + $0x20] sm:$0xff]
      %v767 = vld [vmem:[%s761 + $0x28] sm:$0xff]
      %v768 = vld [vmem:[%s761 + $0x30] sm:$0xff]
      %v769 = vld [vmem:[%s761 + $0x38] sm:$0xff]
      %v770 = vld [vmem:[%s761 + $0x40] sm:$0xff]
      %v771 = vld [vmem:[%s761 + $0x48] sm:$0xff]
      %v772 = vld [vmem:[%s761 + $0x50] sm:$0xff]
      %v773 = vld [vmem:[%s761 + $0x58] sm:$0xff]
      %v774 = vld [vmem:[%s761 + $0x60] sm:$0xff]
      %v775 = vld [vmem:[%s761 + $0x68] sm:$0xff]
      %v776 = vld [vmem:[%s761 + $0x70] sm:$0xff]
      %v777 = vld [vmem:[%s761 + $0x78] sm:$0xff]
      %v778 = vpack.c.bf16 %v763, %v762
      %v779 = vpack.c.bf16 %v765, %v764
      %v780 = vpack.c.bf16 %v767, %v766
      %v781 = vpack.c.bf16 %v769, %v768
      %v782 = vpack.c.bf16 %v771, %v770
      %v783 = vpack.c.bf16 %v773, %v772
      %v784 = vpack.c.bf16 %v775, %v774
      %v785 = vpack.c.bf16 %v777, %v776
      %s786 = scalar_lea.vmem %s266, 12
      %v787 = vld [vmem:[%s786] sm:$0xf]
      %v789 = vsel %vm342, %v778, 0
      %v792 = vsel %vm342, %v779, 0
      %v795 = vsel %vm342, %v780, 0
      %v798 = vsel %vm342, %v781, 0
      %v801 = vsel %vm342, %v782, 0
      %v804 = vsel %vm342, %v783, 0
      %v807 = vsel %vm342, %v784, 0
      %v810 = vsel %vm342, %v785, 0
      %v813 = vsel %vm367, %v787, 0
      %815 = vmatprep.subr.bf16.mxu0 0
      %816 = vmatpush1.bf16.msra.mxu0 %v813
      %817 = vmatprep.subr.bf16.mxu0 0
      %818 = vmatpush1.bf16.msra.mxu0 0
      %819 = vmatprep.subr.bf16.mxu0 0
      %820 = vmatpush1.bf16.msra.mxu0 0
      %821 = vmatprep.subr.bf16.mxu0 0
      %822 = vmatpush1.bf16.msra.mxu0 0
      %823 = vmatprep.subr.bf16.mxu0 0
      %824 = vmatpush1.bf16.msra.mxu0 0
      %825 = vmatprep.subr.bf16.mxu0 0
      %826 = vmatpush1.bf16.msra.mxu0 0
      %827 = vmatprep.subr.bf16.mxu0 0
      %828 = vmatpush1.bf16.msra.mxu0 0
      %829 = vmatprep.subr.bf16.mxu0 0
      %830 = vmatpush1.bf16.msra.mxu0 0
      %831 = vmatprep.subr.bf16.mxu0 0
      %832 = vmatpush1.bf16.msra.mxu0 0
      %833 = vmatprep.subr.bf16.mxu0 0
      %834 = vmatpush1.bf16.msra.mxu0 0
      %835 = vmatprep.subr.bf16.mxu0 0
      %836 = vmatpush1.bf16.msra.mxu0 0
      %837 = vmatprep.subr.bf16.mxu0 0
      %838 = vmatpush1.bf16.msra.mxu0 0
      %839 = vmatprep.subr.bf16.mxu0 0
      %840 = vmatpush1.bf16.msra.mxu0 0
      %841 = vmatprep.subr.bf16.mxu0 0
      %842 = vmatpush1.bf16.msra.mxu0 0
      %843 = vmatprep.subr.bf16.mxu0 0
      %844 = vmatpush1.bf16.msra.mxu0 0
      %845 = vmatprep.subr.bf16.mxu0 0
      %846 = vmatpush1.bf16.msra.mxu0 0
      %847 = vmatprep.mubr.bf16.mxu0 0
      %848 = vmatmul.mubr.bf16.gmra.mrb[0].mxu0 %v789
      %v849 = vpop.f32.mrb[0].mxu0
      %v850 = vadd.f32 0.0, %v849
      %v851 = vpop.f32.mrb[0].mxu0
      %v852 = vpop.f32.mrb[0].mxu0
      %v853 = vadd.f32 0.0, %v852
      %v854 = vpop.f32.mrb[0].mxu0
      %855 = vmatprep.mubr.bf16.mxu0 0
      %856 = vmatmul.mubr.bf16.gmra.mrb[0].mxu0 %v792
      %v857 = vpop.f32.mrb[0].mxu0
      %v858 = vadd.f32 0.0, %v857
      %v859 = vpop.f32.mrb[0].mxu0
      %v860 = vpop.f32.mrb[0].mxu0
      %v861 = vadd.f32 0.0, %v860
      %v862 = vpop.f32.mrb[0].mxu0
      %863 = vmatprep.mubr.bf16.mxu0 0
      %864 = vmatmul.mubr.bf16.gmra.mrb[0].mxu0 %v795
      %v865 = vpop.f32.mrb[0].mxu0
      %v866 = vadd.f32 0.0, %v865
      %v867 = vpop.f32.mrb[0].mxu0
      %v868 = vpop.f32.mrb[0].mxu0
      %v869 = vadd.f32 0.0, %v868
      %v870 = vpop.f32.mrb[0].mxu0
      %871 = vmatprep.mubr.bf16.mxu0 0
      %872 = vmatmul.mubr.bf16.gmra.mrb[0].mxu0 %v798
      %v873 = vpop.f32.mrb[0].mxu0
      %v874 = vadd.f32 0.0, %v873
      %v875 = vpop.f32.mrb[0].mxu0
      %v876 = vpop.f32.mrb[0].mxu0
      %v877 = vadd.f32 0.0, %v876
      %v878 = vpop.f32.mrb[0].mxu0
      %879 = vmatprep.mubr.bf16.mxu0 0
      %880 = vmatmul.mubr.bf16.gmra.mrb[0].mxu0 %v801
      %v881 = vpop.f32.mrb[0].mxu0
      %v882 = vadd.f32 0.0, %v881
      %v883 = vpop.f32.mrb[0].mxu0
      %v884 = vpop.f32.mrb[0].mxu0
      %v885 = vadd.f32 0.0, %v884
      %v886 = vpop.f32.mrb[0].mxu0
      %887 = vmatprep.mubr.bf16.mxu0 0
      %888 = vmatmul.mubr.bf16.gmra.mrb[0].mxu0 %v804
      %v889 = vpop.f32.mrb[0].mxu0
      %v890 = vadd.f32 0.0, %v889
      %v891 = vpop.f32.mrb[0].mxu0
      %v892 = vpop.f32.mrb[0].mxu0
      %v893 = vadd.f32 0.0, %v892
      %v894 = vpop.f32.mrb[0].mxu0
      %895 = vmatprep.mubr.bf16.mxu0 0
      %896 = vmatmul.mubr.bf16.gmra.mrb[0].mxu0 %v807
      %v897 = vpop.f32.mrb[0].mxu0
      %v898 = vadd.f32 0.0, %v897
      %v899 = vpop.f32.mrb[0].mxu0
      %v900 = vpop.f32.mrb[0].mxu0
      %v901 = vadd.f32 0.0, %v900
      %v902 = vpop.f32.mrb[0].mxu0
      %903 = vmatprep.mubr.bf16.mxu0 0
      %904 = vmatmul.mubr.bf16.gmra.mrb[0].mxu0 %v810
      %v905 = vpop.f32.mrb[0].mxu0
      %v906 = vadd.f32 0.0, %v905
      %v907 = vpop.f32.mrb[0].mxu0
      %v908 = vpop.f32.mrb[0].mxu0
      %v909 = vadd.f32 0.0, %v908
      %v910 = vpop.f32.mrb[0].mxu0
      %911 = vdwg.mxu0
      %v912 = vadd.f32 %v744, %v850
      %v913 = vadd.f32 %v745, %v853
      %v914 = vadd.f32 %v746, %v858
      %v915 = vadd.f32 %v747, %v861
      %v916 = vadd.f32 %v748, %v866
      %v917 = vadd.f32 %v749, %v869
      %v918 = vadd.f32 %v750, %v874
      %v919 = vadd.f32 %v751, %v877
      %v920 = vadd.f32 %v752, %v882
      %v921 = vadd.f32 %v753, %v885
      %v922 = vadd.f32 %v754, %v890
      %v923 = vadd.f32 %v755, %v893
      %v924 = vadd.f32 %v756, %v898
      %v925 = vadd.f32 %v757, %v901
      %v926 = vadd.f32 %v758, %v906
      %v927 = vadd.f32 %v759, %v909
      %s928 = sadd.s32 %s286, 24
      %s929 = scalar_lea.vmem %s0, %s928
      %v930 = vld [vmem:[%s929] sm:$0xff]
      %v931 = vld [vmem:[%s929 + $0x8] sm:$0xff]
      %v932 = vld [vmem:[%s929 + $0x10] sm:$0xff]
      %v933 = vld [vmem:[%s929 + $0x18] sm:$0xff]
      %v934 = vld [vmem:[%s929 + $0x20] sm:$0xff]
      %v935 = vld [vmem:[%s929 + $0x28] sm:$0xff]
      %v936 = vld [vmem:[%s929 + $0x30] sm:$0xff]
      %v937 = vld [vmem:[%s929 + $0x38] sm:$0xff]
      %v938 = vld [vmem:[%s929 + $0x40] sm:$0xff]
      %v939 = vld [vmem:[%s929 + $0x48] sm:$0xff]
      %v940 = vld [vmem:[%s929 + $0x50] sm:$0xff]
      %v941 = vld [vmem:[%s929 + $0x58] sm:$0xff]
      %v942 = vld [vmem:[%s929 + $0x60] sm:$0xff]
      %v943 = vld [vmem:[%s929 + $0x68] sm:$0xff]
      %v944 = vld [vmem:[%s929 + $0x70] sm:$0xff]
      %v945 = vld [vmem:[%s929 + $0x78] sm:$0xff]
      %v946 = vpack.c.bf16 %v931, %v930
      %v947 = vpack.c.bf16 %v933, %v932
      %v948 = vpack.c.bf16 %v935, %v934
      %v949 = vpack.c.bf16 %v937, %v936
      %v950 = vpack.c.bf16 %v939, %v938
      %v951 = vpack.c.bf16 %v941, %v940
      %v952 = vpack.c.bf16 %v943, %v942
      %v953 = vpack.c.bf16 %v945, %v944
      %s954 = scalar_lea.vmem %s266, 16
      %v955 = vld [vmem:[%s954] sm:$0xf]
      %v957 = vsel %vm342, %v946, 0
      %v960 = vsel %vm342, %v947, 0
      %v963 = vsel %vm342, %v948, 0
      %v966 = vsel %vm342, %v949, 0
      %v969 = vsel %vm342, %v950, 0
      %v972 = vsel %vm342, %v951, 0
      %v975 = vsel %vm342, %v952, 0
      %v978 = vsel %vm342, %v953, 0
      %v981 = vsel %vm367, %v955, 0
      %983 = vmatprep.subr.bf16.mxu0 0
      %984 = vmatpush1.bf16.msra.mxu0 %v981
      %985 = vmatprep.subr.bf16.mxu0 0
      %986 = vmatpush1.bf16.msra.mxu0 0
      %987 = vmatprep.subr.bf16.mxu0 0
      %988 = vmatpush1.bf16.msra.mxu0 0
      %989 = vmatprep.subr.bf16.mxu0 0
      %990 = vmatpush1.bf16.msra.mxu0 0
      %991 = vmatprep.subr.bf16.mxu0 0
      %992 = vmatpush1.bf16.msra.mxu0 0
      %993 = vmatprep.subr.bf16.mxu0 0
      %994 = vmatpush1.bf16.msra.mxu0 0
      %995 = vmatprep.subr.bf16.mxu0 0
      %996 = vmatpush1.bf16.msra.mxu0 0
      %997 = vmatprep.subr.bf16.mxu0 0
      %998 = vmatpush1.bf16.msra.mxu0 0
      %999 = vmatprep.subr.bf16.mxu0 0
      %1000 = vmatpush1.bf16.msra.mxu0 0
      %1001 = vmatprep.subr.bf16.mxu0 0
      %1002 = vmatpush1.bf16.msra.mxu0 0
      %1003 = vmatprep.subr.bf16.mxu0 0
      %1004 = vmatpush1.bf16.msra.mxu0 0
      %1005 = vmatprep.subr.bf16.mxu0 0
      %1006 = vmatpush1.bf16.msra.mxu0 0
      %1007 = vmatprep.subr.bf16.mxu0 0
      %1008 = vmatpush1.bf16.msra.mxu0 0
      %1009 = vmatprep.subr.bf16.mxu0 0
      %1010 = vmatpush1.bf16.msra.mxu0 0
      %1011 = vmatprep.subr.bf16.mxu0 0
      %1012 = vmatpush1.bf16.msra.mxu0 0
      %1013 = vmatprep.subr.bf16.mxu0 0
      %1014 = vmatpush1.bf16.msra.mxu0 0
      %1015 = vmatprep.mubr.bf16.mxu0 0
      %1016 = vmatmul.mubr.bf16.gmra.mrb[0].mxu0 %v957
      %v1017 = vpop.f32.mrb[0].mxu0
      %v1018 = vadd.f32 0.0, %v1017
      %v1019 = vpop.f32.mrb[0].mxu0
      %v1020 = vpop.f32.mrb[0].mxu0
      %v1021 = vadd.f32 0.0, %v1020
      %v1022 = vpop.f32.mrb[0].mxu0
      %1023 = vmatprep.mubr.bf16.mxu0 0
      %1024 = vmatmul.mubr.bf16.gmra.mrb[0].mxu0 %v960
      %v1025 = vpop.f32.mrb[0].mxu0
      %v1026 = vadd.f32 0.0, %v1025
      %v1027 = vpop.f32.mrb[0].mxu0
      %v1028 = vpop.f32.mrb[0].mxu0
      %v1029 = vadd.f32 0.0, %v1028
      %v1030 = vpop.f32.mrb[0].mxu0
      %1031 = vmatprep.mubr.bf16.mxu0 0
      %1032 = vmatmul.mubr.bf16.gmra.mrb[0].mxu0 %v963
      %v1033 = vpop.f32.mrb[0].mxu0
      %v1034 = vadd.f32 0.0, %v1033
      %v1035 = vpop.f32.mrb[0].mxu0
      %v1036 = vpop.f32.mrb[0].mxu0
      %v1037 = vadd.f32 0.0, %v1036
      %v1038 = vpop.f32.mrb[0].mxu0
      %1039 = vmatprep.mubr.bf16.mxu0 0
      %1040 = vmatmul.mubr.bf16.gmra.mrb[0].mxu0 %v966
      %v1041 = vpop.f32.mrb[0].mxu0
      %v1042 = vadd.f32 0.0, %v1041
      %v1043 = vpop.f32.mrb[0].mxu0
      %v1044 = vpop.f32.mrb[0].mxu0
      %v1045 = vadd.f32 0.0, %v1044
      %v1046 = vpop.f32.mrb[0].mxu0
      %1047 = vmatprep.mubr.bf16.mxu0 0
      %1048 = vmatmul.mubr.bf16.gmra.mrb[0].mxu0 %v969
      %v1049 = vpop.f32.mrb[0].mxu0
      %v1050 = vadd.f32 0.0, %v1049
      %v1051 = vpop.f32.mrb[0].mxu0
      %v1052 = vpop.f32.mrb[0].mxu0
      %v1053 = vadd.f32 0.0, %v1052
      %v1054 = vpop.f32.mrb[0].mxu0
      %1055 = vmatprep.mubr.bf16.mxu0 0
      %1056 = vmatmul.mubr.bf16.gmra.mrb[0].mxu0 %v972
      %v1057 = vpop.f32.mrb[0].mxu0
      %v1058 = vadd.f32 0.0, %v1057
      %v1059 = vpop.f32.mrb[0].mxu0
      %v1060 = vpop.f32.mrb[0].mxu0
      %v1061 = vadd.f32 0.0, %v1060
      %v1062 = vpop.f32.mrb[0].mxu0
      %1063 = vmatprep.mubr.bf16.mxu0 0
      %1064 = vmatmul.mubr.bf16.gmra.mrb[0].mxu0 %v975
      %v1065 = vpop.f32.mrb[0].mxu0
      %v1066 = vadd.f32 0.0, %v1065
      %v1067 = vpop.f32.mrb[0].mxu0
      %v1068 = vpop.f32.mrb[0].mxu0
      %v1069 = vadd.f32 0.0, %v1068
      %v1070 = vpop.f32.mrb[0].mxu0
      %1071 = vmatprep.mubr.bf16.mxu0 0
      %1072 = vmatmul.mubr.bf16.gmra.mrb[0].mxu0 %v978
      %v1073 = vpop.f32.mrb[0].mxu0
      %v1074 = vadd.f32 0.0, %v1073
      %v1075 = vpop.f32.mrb[0].mxu0
      %v1076 = vpop.f32.mrb[0].mxu0
      %v1077 = vadd.f32 0.0, %v1076
      %v1078 = vpop.f32.mrb[0].mxu0
      %1079 = vdwg.mxu0
      %v1080 = vadd.f32 %v912, %v1018
      %v1081 = vadd.f32 %v913, %v1021
      %v1082 = vadd.f32 %v914, %v1026
      %v1083 = vadd.f32 %v915, %v1029
      %v1084 = vadd.f32 %v916, %v1034
      %v1085 = vadd.f32 %v917, %v1037
      %v1086 = vadd.f32 %v918, %v1042
      %v1087 = vadd.f32 %v919, %v1045
      %v1088 = vadd.f32 %v920, %v1050
      %v1089 = vadd.f32 %v921, %v1053
      %v1090 = vadd.f32 %v922, %v1058
      %v1091 = vadd.f32 %v923, %v1061
      %v1092 = vadd.f32 %v924, %v1066
      %v1093 = vadd.f32 %v925, %v1069
      %v1094 = vadd.f32 %v926, %v1074
      %v1095 = vadd.f32 %v927, %v1077
      %s1096 = sadd.s32 %s286, 25
      %s1097 = scalar_lea.vmem %s0, %s1096
      %v1098 = vld [vmem:[%s1097] sm:$0xff]
      %v1099 = vld [vmem:[%s1097 + $0x8] sm:$0xff]
      %v1100 = vld [vmem:[%s1097 + $0x10] sm:$0xff]
      %v1101 = vld [vmem:[%s1097 + $0x18] sm:$0xff]
      %v1102 = vld [vmem:[%s1097 + $0x20] sm:$0xff]
      %v1103 = vld [vmem:[%s1097 + $0x28] sm:$0xff]
      %v1104 = vld [vmem:[%s1097 + $0x30] sm:$0xff]
      %v1105 = vld [vmem:[%s1097 + $0x38] sm:$0xff]
      %v1106 = vld [vmem:[%s1097 + $0x40] sm:$0xff]
      %v1107 = vld [vmem:[%s1097 + $0x48] sm:$0xff]
      %v1108 = vld [vmem:[%s1097 + $0x50] sm:$0xff]
      %v1109 = vld [vmem:[%s1097 + $0x58] sm:$0xff]
      %v1110 = vld [vmem:[%s1097 + $0x60] sm:$0xff]
      %v1111 = vld [vmem:[%s1097 + $0x68] sm:$0xff]
      %v1112 = vld [vmem:[%s1097 + $0x70] sm:$0xff]
      %v1113 = vld [vmem:[%s1097 + $0x78] sm:$0xff]
      %v1114 = vpack.c.bf16 %v1099, %v1098
      %v1115 = vpack.c.bf16 %v1101, %v1100
      %v1116 = vpack.c.bf16 %v1103, %v1102
      %v1117 = vpack.c.bf16 %v1105, %v1104
      %v1118 = vpack.c.bf16 %v1107, %v1106
      %v1119 = vpack.c.bf16 %v1109, %v1108
      %v1120 = vpack.c.bf16 %v1111, %v1110
      %v1121 = vpack.c.bf16 %v1113, %v1112
      %s1122 = scalar_lea.vmem %s266, 20
      %v1123 = vld [vmem:[%s1122] sm:$0xf]
      %v1125 = vsel %vm342, %v1114, 0
      %v1128 = vsel %vm342, %v1115, 0
      %v1131 = vsel %vm342, %v1116, 0
      %v1134 = vsel %vm342, %v1117, 0
      %v1137 = vsel %vm342, %v1118, 0
      %v1140 = vsel %vm342, %v1119, 0
      %v1143 = vsel %vm342, %v1120, 0
      %v1146 = vsel %vm342, %v1121, 0
      %v1149 = vsel %vm367, %v1123, 0
      %1151 = vmatprep.subr.bf16.mxu0 0
      %1152 = vmatpush1.bf16.msra.mxu0 %v1149
      %1153 = vmatprep.subr.bf16.mxu0 0
      %1154 = vmatpush1.bf16.msra.mxu0 0
      %1155 = vmatprep.subr.bf16.mxu0 0
      %1156 = vmatpush1.bf16.msra.mxu0 0
      %1157 = vmatprep.subr.bf16.mxu0 0
      %1158 = vmatpush1.bf16.msra.mxu0 0
      %1159 = vmatprep.subr.bf16.mxu0 0
      %1160 = vmatpush1.bf16.msra.mxu0 0
      %1161 = vmatprep.subr.bf16.mxu0 0
      %1162 = vmatpush1.bf16.msra.mxu0 0
      %1163 = vmatprep.subr.bf16.mxu0 0
      %1164 = vmatpush1.bf16.msra.mxu0 0
      %1165 = vmatprep.subr.bf16.mxu0 0
      %1166 = vmatpush1.bf16.msra.mxu0 0
      %1167 = vmatprep.subr.bf16.mxu0 0
      %1168 = vmatpush1.bf16.msra.mxu0 0
      %1169 = vmatprep.subr.bf16.mxu0 0
      %1170 = vmatpush1.bf16.msra.mxu0 0
      %1171 = vmatprep.subr.bf16.mxu0 0
      %1172 = vmatpush1.bf16.msra.mxu0 0
      %1173 = vmatprep.subr.bf16.mxu0 0
      %1174 = vmatpush1.bf16.msra.mxu0 0
      %1175 = vmatprep.subr.bf16.mxu0 0
      %1176 = vmatpush1.bf16.msra.mxu0 0
      %1177 = vmatprep.subr.bf16.mxu0 0
      %1178 = vmatpush1.bf16.msra.mxu0 0
      %1179 = vmatprep.subr.bf16.mxu0 0
      %1180 = vmatpush1.bf16.msra.mxu0 0
      %1181 = vmatprep.subr.bf16.mxu0 0
      %1182 = vmatpush1.bf16.msra.mxu0 0
      %1183 = vmatprep.mubr.bf16.mxu0 0
      %1184 = vmatmul.mubr.bf16.gmra.mrb[0].mxu0 %v1125
      %v1185 = vpop.f32.mrb[0].mxu0
      %v1186 = vadd.f32 0.0, %v1185
      %v1187 = vpop.f32.mrb[0].mxu0
      %v1188 = vpop.f32.mrb[0].mxu0
      %v1189 = vadd.f32 0.0, %v1188
      %v1190 = vpop.f32.mrb[0].mxu0
      %1191 = vmatprep.mubr.bf16.mxu0 0
      %1192 = vmatmul.mubr.bf16.gmra.mrb[0].mxu0 %v1128
      %v1193 = vpop.f32.mrb[0].mxu0
      %v1194 = vadd.f32 0.0, %v1193
      %v1195 = vpop.f32.mrb[0].mxu0
      %v1196 = vpop.f32.mrb[0].mxu0
      %v1197 = vadd.f32 0.0, %v1196
      %v1198 = vpop.f32.mrb[0].mxu0
      %1199 = vmatprep.mubr.bf16.mxu0 0
      %1200 = vmatmul.mubr.bf16.gmra.mrb[0].mxu0 %v1131
      %v1201 = vpop.f32.mrb[0].mxu0
      %v1202 = vadd.f32 0.0, %v1201
      %v1203 = vpop.f32.mrb[0].mxu0
      %v1204 = vpop.f32.mrb[0].mxu0
      %v1205 = vadd.f32 0.0, %v1204
      %v1206 = vpop.f32.mrb[0].mxu0
      %1207 = vmatprep.mubr.bf16.mxu0 0
      %1208 = vmatmul.mubr.bf16.gmra.mrb[0].mxu0 %v1134
      %v1209 = vpop.f32.mrb[0].mxu0
      %v1210 = vadd.f32 0.0, %v1209
      %v1211 = vpop.f32.mrb[0].mxu0
      %v1212 = vpop.f32.mrb[0].mxu0
      %v1213 = vadd.f32 0.0, %v1212
      %v1214 = vpop.f32.mrb[0].mxu0
      %1215 = vmatprep.mubr.bf16.mxu0 0
      %1216 = vmatmul.mubr.bf16.gmra.mrb[0].mxu0 %v1137
      %v1217 = vpop.f32.mrb[0].mxu0
      %v1218 = vadd.f32 0.0, %v1217
      %v1219 = vpop.f32.mrb[0].mxu0
      %v1220 = vpop.f32.mrb[0].mxu0
      %v1221 = vadd.f32 0.0, %v1220
      %v1222 = vpop.f32.mrb[0].mxu0
      %1223 = vmatprep.mubr.bf16.mxu0 0
      %1224 = vmatmul.mubr.bf16.gmra.mrb[0].mxu0 %v1140
      %v1225 = vpop.f32.mrb[0].mxu0
      %v1226 = vadd.f32 0.0, %v1225
      %v1227 = vpop.f32.mrb[0].mxu0
      %v1228 = vpop.f32.mrb[0].mxu0
      %v1229 = vadd.f32 0.0, %v1228
      %v1230 = vpop.f32.mrb[0].mxu0
      %1231 = vmatprep.mubr.bf16.mxu0 0
      %1232 = vmatmul.mubr.bf16.gmra.mrb[0].mxu0 %v1143
      %v1233 = vpop.f32.mrb[0].mxu0
      %v1234 = vadd.f32 0.0, %v1233
      %v1235 = vpop.f32.mrb[0].mxu0
      %v1236 = vpop.f32.mrb[0].mxu0
      %v1237 = vadd.f32 0.0, %v1236
      %v1238 = vpop.f32.mrb[0].mxu0
      %1239 = vmatprep.mubr.bf16.mxu0 0
      %1240 = vmatmul.mubr.bf16.gmra.mrb[0].mxu0 %v1146
      %v1241 = vpop.f32.mrb[0].mxu0
      %v1242 = vadd.f32 0.0, %v1241
      %v1243 = vpop.f32.mrb[0].mxu0
      %v1244 = vpop.f32.mrb[0].mxu0
      %v1245 = vadd.f32 0.0, %v1244
      %v1246 = vpop.f32.mrb[0].mxu0
      %1247 = vdwg.mxu0
      %v1248 = vadd.f32 %v1080, %v1186
      %v1249 = vadd.f32 %v1081, %v1189
      %v1250 = vadd.f32 %v1082, %v1194
      %v1251 = vadd.f32 %v1083, %v1197
      %v1252 = vadd.f32 %v1084, %v1202
      %v1253 = vadd.f32 %v1085, %v1205
      %v1254 = vadd.f32 %v1086, %v1210
      %v1255 = vadd.f32 %v1087, %v1213
      %v1256 = vadd.f32 %v1088, %v1218
      %v1257 = vadd.f32 %v1089, %v1221
      %v1258 = vadd.f32 %v1090, %v1226
      %v1259 = vadd.f32 %v1091, %v1229
      %v1260 = vadd.f32 %v1092, %v1234
      %v1261 = vadd.f32 %v1093, %v1237
      %v1262 = vadd.f32 %v1094, %v1242
      %v1263 = vadd.f32 %v1095, %v1245
      %s1264 = sadd.s32 %s286, 41
      %s1265 = scalar_lea.vmem %s0, %s1264
      %v1266 = vld [vmem:[%s1265] sm:$0xff]
      %v1267 = vld [vmem:[%s1265 + $0x8] sm:$0xff]
      %v1268 = vld [vmem:[%s1265 + $0x10] sm:$0xff]
      %v1269 = vld [vmem:[%s1265 + $0x18] sm:$0xff]
      %v1270 = vld [vmem:[%s1265 + $0x20] sm:$0xff]
      %v1271 = vld [vmem:[%s1265 + $0x28] sm:$0xff]
      %v1272 = vld [vmem:[%s1265 + $0x30] sm:$0xff]
      %v1273 = vld [vmem:[%s1265 + $0x38] sm:$0xff]
      %v1274 = vld [vmem:[%s1265 + $0x40] sm:$0xff]
      %v1275 = vld [vmem:[%s1265 + $0x48] sm:$0xff]
      %v1276 = vld [vmem:[%s1265 + $0x50] sm:$0xff]
      %v1277 = vld [vmem:[%s1265 + $0x58] sm:$0xff]
      %v1278 = vld [vmem:[%s1265 + $0x60] sm:$0xff]
      %v1279 = vld [vmem:[%s1265 + $0x68] sm:$0xff]
      %v1280 = vld [vmem:[%s1265 + $0x70] sm:$0xff]
      %v1281 = vld [vmem:[%s1265 + $0x78] sm:$0xff]
      %v1282 = vpack.c.bf16 %v1267, %v1266
      %v1283 = vpack.c.bf16 %v1269, %v1268
      %v1284 = vpack.c.bf16 %v1271, %v1270
      %v1285 = vpack.c.bf16 %v1273, %v1272
      %v1286 = vpack.c.bf16 %v1275, %v1274
      %v1287 = vpack.c.bf16 %v1277, %v1276
      %v1288 = vpack.c.bf16 %v1279, %v1278
      %v1289 = vpack.c.bf16 %v1281, %v1280
      %s1290 = scalar_lea.vmem %s266, 24
      %v1291 = vld [vmem:[%s1290] sm:$0xf]
      %v1293 = vsel %vm342, %v1282, 0
      %v1296 = vsel %vm342, %v1283, 0
      %v1299 = vsel %vm342, %v1284, 0
      %v1302 = vsel %vm342, %v1285, 0
      %v1305 = vsel %vm342, %v1286, 0
      %v1308 = vsel %vm342, %v1287, 0
      %v1311 = vsel %vm342, %v1288, 0
      %v1314 = vsel %vm342, %v1289, 0
      %v1317 = vsel %vm367, %v1291, 0
      %1319 = vmatprep.subr.bf16.mxu0 0
      %1320 = vmatpush1.bf16.msra.mxu0 %v1317
      %1321 = vmatprep.subr.bf16.mxu0 0
      %1322 = vmatpush1.bf16.msra.mxu0 0
      %1323 = vmatprep.subr.bf16.mxu0 0
      %1324 = vmatpush1.bf16.msra.mxu0 0
      %1325 = vmatprep.subr.bf16.mxu0 0
      %1326 = vmatpush1.bf16.msra.mxu0 0
      %1327 = vmatprep.subr.bf16.mxu0 0
      %1328 = vmatpush1.bf16.msra.mxu0 0
      %1329 = vmatprep.subr.bf16.mxu0 0
      %1330 = vmatpush1.bf16.msra.mxu0 0
      %1331 = vmatprep.subr.bf16.mxu0 0
      %1332 = vmatpush1.bf16.msra.mxu0 0
      %1333 = vmatprep.subr.bf16.mxu0 0
      %1334 = vmatpush1.bf16.msra.mxu0 0
      %1335 = vmatprep.subr.bf16.mxu0 0
      %1336 = vmatpush1.bf16.msra.mxu0 0
      %1337 = vmatprep.subr.bf16.mxu0 0
      %1338 = vmatpush1.bf16.msra.mxu0 0
      %1339 = vmatprep.subr.bf16.mxu0 0
      %1340 = vmatpush1.bf16.msra.mxu0 0
      %1341 = vmatprep.subr.bf16.mxu0 0
      %1342 = vmatpush1.bf16.msra.mxu0 0
      %1343 = vmatprep.subr.bf16.mxu0 0
      %1344 = vmatpush1.bf16.msra.mxu0 0
      %1345 = vmatprep.subr.bf16.mxu0 0
      %1346 = vmatpush1.bf16.msra.mxu0 0
      %1347 = vmatprep.subr.bf16.mxu0 0
      %1348 = vmatpush1.bf16.msra.mxu0 0
      %1349 = vmatprep.subr.bf16.mxu0 0
      %1350 = vmatpush1.bf16.msra.mxu0 0
      %1351 = vmatprep.mubr.bf16.mxu0 0
      %1352 = vmatmul.mubr.bf16.gmra.mrb[0].mxu0 %v1293
      %v1353 = vpop.f32.mrb[0].mxu0
      %v1354 = vadd.f32 0.0, %v1353
      %v1355 = vpop.f32.mrb[0].mxu0
      %v1356 = vpop.f32.mrb[0].mxu0
      %v1357 = vadd.f32 0.0, %v1356
      %v1358 = vpop.f32.mrb[0].mxu0
      %1359 = vmatprep.mubr.bf16.mxu0 0
      %1360 = vmatmul.mubr.bf16.gmra.mrb[0].mxu0 %v1296
      %v1361 = vpop.f32.mrb[0].mxu0
      %v1362 = vadd.f32 0.0, %v1361
      %v1363 = vpop.f32.mrb[0].mxu0
      %v1364 = vpop.f32.mrb[0].mxu0
      %v1365 = vadd.f32 0.0, %v1364
      %v1366 = vpop.f32.mrb[0].mxu0
      %1367 = vmatprep.mubr.bf16.mxu0 0
      %1368 = vmatmul.mubr.bf16.gmra.mrb[0].mxu0 %v1299
      %v1369 = vpop.f32.mrb[0].mxu0
      %v1370 = vadd.f32 0.0, %v1369
      %v1371 = vpop.f32.mrb[0].mxu0
      %v1372 = vpop.f32.mrb[0].mxu0
      %v1373 = vadd.f32 0.0, %v1372
      %v1374 = vpop.f32.mrb[0].mxu0
      %1375 = vmatprep.mubr.bf16.mxu0 0
      %1376 = vmatmul.mubr.bf16.gmra.mrb[0].mxu0 %v1302
      %v1377 = vpop.f32.mrb[0].mxu0
      %v1378 = vadd.f32 0.0, %v1377
      %v1379 = vpop.f32.mrb[0].mxu0
      %v1380 = vpop.f32.mrb[0].mxu0
      %v1381 = vadd.f32 0.0, %v1380
      %v1382 = vpop.f32.mrb[0].mxu0
      %1383 = vmatprep.mubr.bf16.mxu0 0
      %1384 = vmatmul.mubr.bf16.gmra.mrb[0].mxu0 %v1305
      %v1385 = vpop.f32.mrb[0].mxu0
      %v1386 = vadd.f32 0.0, %v1385
      %v1387 = vpop.f32.mrb[0].mxu0
      %v1388 = vpop.f32.mrb[0].mxu0
      %v1389 = vadd.f32 0.0, %v1388
      %v1390 = vpop.f32.mrb[0].mxu0
      %1391 = vmatprep.mubr.bf16.mxu0 0
      %1392 = vmatmul.mubr.bf16.gmra.mrb[0].mxu0 %v1308
      %v1393 = vpop.f32.mrb[0].mxu0
      %v1394 = vadd.f32 0.0, %v1393
      %v1395 = vpop.f32.mrb[0].mxu0
      %v1396 = vpop.f32.mrb[0].mxu0
      %v1397 = vadd.f32 0.0, %v1396
      %v1398 = vpop.f32.mrb[0].mxu0
      %1399 = vmatprep.mubr.bf16.mxu0 0
      %1400 = vmatmul.mubr.bf16.gmra.mrb[0].mxu0 %v1311
      %v1401 = vpop.f32.mrb[0].mxu0
      %v1402 = vadd.f32 0.0, %v1401
      %v1403 = vpop.f32.mrb[0].mxu0
      %v1404 = vpop.f32.mrb[0].mxu0
      %v1405 = vadd.f32 0.0, %v1404
      %v1406 = vpop.f32.mrb[0].mxu0
      %1407 = vmatprep.mubr.bf16.mxu0 0
      %1408 = vmatmul.mubr.bf16.gmra.mrb[0].mxu0 %v1314
      %v1409 = vpop.f32.mrb[0].mxu0
      %v1410 = vadd.f32 0.0, %v1409
      %v1411 = vpop.f32.mrb[0].mxu0
      %v1412 = vpop.f32.mrb[0].mxu0
      %v1413 = vadd.f32 0.0, %v1412
      %v1414 = vpop.f32.mrb[0].mxu0
      %1415 = vdwg.mxu0
      %v1416 = vadd.f32 %v1248, %v1354
      %v1417 = vadd.f32 %v1249, %v1357
      %v1418 = vadd.f32 %v1250, %v1362
      %v1419 = vadd.f32 %v1251, %v1365
      %v1420 = vadd.f32 %v1252, %v1370
      %v1421 = vadd.f32 %v1253, %v1373
      %v1422 = vadd.f32 %v1254, %v1378
      %v1423 = vadd.f32 %v1255, %v1381
      %v1424 = vadd.f32 %v1256, %v1386
      %v1425 = vadd.f32 %v1257, %v1389
      %v1426 = vadd.f32 %v1258, %v1394
      %v1427 = vadd.f32 %v1259, %v1397
      %v1428 = vadd.f32 %v1260, %v1402
      %v1429 = vadd.f32 %v1261, %v1405
      %v1430 = vadd.f32 %v1262, %v1410
      %v1431 = vadd.f32 %v1263, %v1413
      %s1432 = sadd.s32 %s286, 42
      %s1433 = scalar_lea.vmem %s0, %s1432
      %v1434 = vld [vmem:[%s1433] sm:$0xff]
      %v1435 = vld [vmem:[%s1433 + $0x8] sm:$0xff]
      %v1436 = vld [vmem:[%s1433 + $0x10] sm:$0xff]
      %v1437 = vld [vmem:[%s1433 + $0x18] sm:$0xff]
      %v1438 = vld [vmem:[%s1433 + $0x20] sm:$0xff]
      %v1439 = vld [vmem:[%s1433 + $0x28] sm:$0xff]
      %v1440 = vld [vmem:[%s1433 + $0x30] sm:$0xff]
      %v1441 = vld [vmem:[%s1433 + $0x38] sm:$0xff]
      %v1442 = vld [vmem:[%s1433 + $0x40] sm:$0xff]
      %v1443 = vld [vmem:[%s1433 + $0x48] sm:$0xff]
      %v1444 = vld [vmem:[%s1433 + $0x50] sm:$0xff]
      %v1445 = vld [vmem:[%s1433 + $0x58] sm:$0xff]
      %v1446 = vld [vmem:[%s1433 + $0x60] sm:$0xff]
      %v1447 = vld [vmem:[%s1433 + $0x68] sm:$0xff]
      %v1448 = vld [vmem:[%s1433 + $0x70] sm:$0xff]
      %v1449 = vld [vmem:[%s1433 + $0x78] sm:$0xff]
      %v1450 = vpack.c.bf16 %v1435, %v1434
      %v1451 = vpack.c.bf16 %v1437, %v1436
      %v1452 = vpack.c.bf16 %v1439, %v1438
      %v1453 = vpack.c.bf16 %v1441, %v1440
      %v1454 = vpack.c.bf16 %v1443, %v1442
      %v1455 = vpack.c.bf16 %v1445, %v1444
      %v1456 = vpack.c.bf16 %v1447, %v1446
      %v1457 = vpack.c.bf16 %v1449, %v1448
      %s1458 = scalar_lea.vmem %s266, 28
      %v1459 = vld [vmem:[%s1458] sm:$0xf]
      %v1461 = vsel %vm342, %v1450, 0
      %v1464 = vsel %vm342, %v1451, 0
      %v1467 = vsel %vm342, %v1452, 0
      %v1470 = vsel %vm342, %v1453, 0
      %v1473 = vsel %vm342, %v1454, 0
      %v1476 = vsel %vm342, %v1455, 0
      %v1479 = vsel %vm342, %v1456, 0
      %v1482 = vsel %vm342, %v1457, 0
      %v1485 = vsel %vm367, %v1459, 0
      %1487 = vmatprep.subr.bf16.mxu0 0
      %1488 = vmatpush1.bf16.msra.mxu0 %v1485
      %1489 = vmatprep.subr.bf16.mxu0 0
      %1490 = vmatpush1.bf16.msra.mxu0 0
      %1491 = vmatprep.subr.bf16.mxu0 0
      %1492 = vmatpush1.bf16.msra.mxu0 0
      %1493 = vmatprep.subr.bf16.mxu0 0
      %1494 = vmatpush1.bf16.msra.mxu0 0
      %1495 = vmatprep.subr.bf16.mxu0 0
      %1496 = vmatpush1.bf16.msra.mxu0 0
      %1497 = vmatprep.subr.bf16.mxu0 0
      %1498 = vmatpush1.bf16.msra.mxu0 0
      %1499 = vmatprep.subr.bf16.mxu0 0
      %1500 = vmatpush1.bf16.msra.mxu0 0
      %1501 = vmatprep.subr.bf16.mxu0 0
      %1502 = vmatpush1.bf16.msra.mxu0 0
      %1503 = vmatprep.subr.bf16.mxu0 0
      %1504 = vmatpush1.bf16.msra.mxu0 0
      %1505 = vmatprep.subr.bf16.mxu0 0
      %1506 = vmatpush1.bf16.msra.mxu0 0
      %1507 = vmatprep.subr.bf16.mxu0 0
      %1508 = vmatpush1.bf16.msra.mxu0 0
      %1509 = vmatprep.subr.bf16.mxu0 0
      %1510 = vmatpush1.bf16.msra.mxu0 0
      %1511 = vmatprep.subr.bf16.mxu0 0
      %1512 = vmatpush1.bf16.msra.mxu0 0
      %1513 = vmatprep.subr.bf16.mxu0 0
      %1514 = vmatpush1.bf16.msra.mxu0 0
      %1515 = vmatprep.subr.bf16.mxu0 0
      %1516 = vmatpush1.bf16.msra.mxu0 0
      %1517 = vmatprep.subr.bf16.mxu0 0
      %1518 = vmatpush1.bf16.msra.mxu0 0
      %1519 = vmatprep.mubr.bf16.mxu0 0
      %1520 = vmatmul.mubr.bf16.gmra.mrb[0].mxu0 %v1461
      %v1521 = vpop.f32.mrb[0].mxu0
      %v1522 = vadd.f32 0.0, %v1521
      %v1523 = vpop.f32.mrb[0].mxu0
      %v1524 = vpop.f32.mrb[0].mxu0
      %v1525 = vadd.f32 0.0, %v1524
      %v1526 = vpop.f32.mrb[0].mxu0
      %1527 = vmatprep.mubr.bf16.mxu0 0
      %1528 = vmatmul.mubr.bf16.gmra.mrb[0].mxu0 %v1464
      %v1529 = vpop.f32.mrb[0].mxu0
      %v1530 = vadd.f32 0.0, %v1529
      %v1531 = vpop.f32.mrb[0].mxu0
      %v1532 = vpop.f32.mrb[0].mxu0
      %v1533 = vadd.f32 0.0, %v1532
      %v1534 = vpop.f32.mrb[0].mxu0
      %1535 = vmatprep.mubr.bf16.mxu0 0
      %1536 = vmatmul.mubr.bf16.gmra.mrb[0].mxu0 %v1467
      %v1537 = vpop.f32.mrb[0].mxu0
      %v1538 = vadd.f32 0.0, %v1537
      %v1539 = vpop.f32.mrb[0].mxu0
      %v1540 = vpop.f32.mrb[0].mxu0
      %v1541 = vadd.f32 0.0, %v1540
      %v1542 = vpop.f32.mrb[0].mxu0
      %1543 = vmatprep.mubr.bf16.mxu0 0
      %1544 = vmatmul.mubr.bf16.gmra.mrb[0].mxu0 %v1470
      %v1545 = vpop.f32.mrb[0].mxu0
      %v1546 = vadd.f32 0.0, %v1545
      %v1547 = vpop.f32.mrb[0].mxu0
      %v1548 = vpop.f32.mrb[0].mxu0
      %v1549 = vadd.f32 0.0, %v1548
      %v1550 = vpop.f32.mrb[0].mxu0
      %1551 = vmatprep.mubr.bf16.mxu0 0
      %1552 = vmatmul.mubr.bf16.gmra.mrb[0].mxu0 %v1473
      %v1553 = vpop.f32.mrb[0].mxu0
      %v1554 = vadd.f32 0.0, %v1553
      %v1555 = vpop.f32.mrb[0].mxu0
      %v1556 = vpop.f32.mrb[0].mxu0
      %v1557 = vadd.f32 0.0, %v1556
      %v1558 = vpop.f32.mrb[0].mxu0
      %1559 = vmatprep.mubr.bf16.mxu0 0
      %1560 = vmatmul.mubr.bf16.gmra.mrb[0].mxu0 %v1476
      %v1561 = vpop.f32.mrb[0].mxu0
      %v1562 = vadd.f32 0.0, %v1561
      %v1563 = vpop.f32.mrb[0].mxu0
      %v1564 = vpop.f32.mrb[0].mxu0
      %v1565 = vadd.f32 0.0, %v1564
      %v1566 = vpop.f32.mrb[0].mxu0
      %1567 = vmatprep.mubr.bf16.mxu0 0
      %1568 = vmatmul.mubr.bf16.gmra.mrb[0].mxu0 %v1479
      %v1569 = vpop.f32.mrb[0].mxu0
      %v1570 = vadd.f32 0.0, %v1569
      %v1571 = vpop.f32.mrb[0].mxu0
      %v1572 = vpop.f32.mrb[0].mxu0
      %v1573 = vadd.f32 0.0, %v1572
      %v1574 = vpop.f32.mrb[0].mxu0
      %1575 = vmatprep.mubr.bf16.mxu0 0
      %1576 = vmatmul.mubr.bf16.gmra.mrb[0].mxu0 %v1482
      %v1577 = vpop.f32.mrb[0].mxu0
      %v1578 = vadd.f32 0.0, %v1577
      %v1579 = vpop.f32.mrb[0].mxu0
      %v1580 = vpop.f32.mrb[0].mxu0
      %v1581 = vadd.f32 0.0, %v1580
      %v1582 = vpop.f32.mrb[0].mxu0
      %1583 = vdwg.mxu0
      %v1584 = vadd.f32 %v1416, %v1522
      %v1585 = vadd.f32 %v1417, %v1525
      %v1586 = vadd.f32 %v1418, %v1530
      %v1587 = vadd.f32 %v1419, %v1533
      %v1588 = vadd.f32 %v1420, %v1538
      %v1589 = vadd.f32 %v1421, %v1541
      %v1590 = vadd.f32 %v1422, %v1546
      %v1591 = vadd.f32 %v1423, %v1549
      %v1592 = vadd.f32 %v1424, %v1554
      %v1593 = vadd.f32 %v1425, %v1557
      %v1594 = vadd.f32 %v1426, %v1562
      %v1595 = vadd.f32 %v1427, %v1565
      %v1596 = vadd.f32 %v1428, %v1570
      %v1597 = vadd.f32 %v1429, %v1573
      %v1598 = vadd.f32 %v1430, %v1578
      %v1599 = vadd.f32 %v1431, %v1581
      %s1600 = sadd.s32 %s286, 43
      %s1601 = scalar_lea.vmem %s0, %s1600
      %v1602 = vld [vmem:[%s1601] sm:$0xff]
      %v1603 = vld [vmem:[%s1601 + $0x8] sm:$0xff]
      %v1604 = vld [vmem:[%s1601 + $0x10] sm:$0xff]
      %v1605 = vld [vmem:[%s1601 + $0x18] sm:$0xff]
      %v1606 = vld [vmem:[%s1601 + $0x20] sm:$0xff]
      %v1607 = vld [vmem:[%s1601 + $0x28] sm:$0xff]
      %v1608 = vld [vmem:[%s1601 + $0x30] sm:$0xff]
      %v1609 = vld [vmem:[%s1601 + $0x38] sm:$0xff]
      %v1610 = vld [vmem:[%s1601 + $0x40] sm:$0xff]
      %v1611 = vld [vmem:[%s1601 + $0x48] sm:$0xff]
      %v1612 = vld [vmem:[%s1601 + $0x50] sm:$0xff]
      %v1613 = vld [vmem:[%s1601 + $0x58] sm:$0xff]
      %v1614 = vld [vmem:[%s1601 + $0x60] sm:$0xff]
      %v1615 = vld [vmem:[%s1601 + $0x68] sm:$0xff]
      %v1616 = vld [vmem:[%s1601 + $0x70] sm:$0xff]
      %v1617 = vld [vmem:[%s1601 + $0x78] sm:$0xff]
      %v1618 = vpack.c.bf16 %v1603, %v1602
      %v1619 = vpack.c.bf16 %v1605, %v1604
      %v1620 = vpack.c.bf16 %v1607, %v1606
      %v1621 = vpack.c.bf16 %v1609, %v1608
      %v1622 = vpack.c.bf16 %v1611, %v1610
      %v1623 = vpack.c.bf16 %v1613, %v1612
      %v1624 = vpack.c.bf16 %v1615, %v1614
      %v1625 = vpack.c.bf16 %v1617, %v1616
      %s1626 = scalar_lea.vmem %s266, 32
      %v1627 = vld [vmem:[%s1626] sm:$0xf]
      %v1629 = vsel %vm342, %v1618, 0
      %v1632 = vsel %vm342, %v1619, 0
      %v1635 = vsel %vm342, %v1620, 0
      %v1638 = vsel %vm342, %v1621, 0
      %v1641 = vsel %vm342, %v1622, 0
      %v1644 = vsel %vm342, %v1623, 0
      %v1647 = vsel %vm342, %v1624, 0
      %v1650 = vsel %vm342, %v1625, 0
      %v1653 = vsel %vm367, %v1627, 0
      %1655 = vmatprep.subr.bf16.mxu0 0
      %1656 = vmatpush1.bf16.msra.mxu0 %v1653
      %1657 = vmatprep.subr.bf16.mxu0 0
      %1658 = vmatpush1.bf16.msra.mxu0 0
      %1659 = vmatprep.subr.bf16.mxu0 0
      %1660 = vmatpush1.bf16.msra.mxu0 0
      %1661 = vmatprep.subr.bf16.mxu0 0
      %1662 = vmatpush1.bf16.msra.mxu0 0
      %1663 = vmatprep.subr.bf16.mxu0 0
      %1664 = vmatpush1.bf16.msra.mxu0 0
      %1665 = vmatprep.subr.bf16.mxu0 0
      %1666 = vmatpush1.bf16.msra.mxu0 0
      %1667 = vmatprep.subr.bf16.mxu0 0
      %1668 = vmatpush1.bf16.msra.mxu0 0
      %1669 = vmatprep.subr.bf16.mxu0 0
      %1670 = vmatpush1.bf16.msra.mxu0 0
      %1671 = vmatprep.subr.bf16.mxu0 0
      %1672 = vmatpush1.bf16.msra.mxu0 0
      %1673 = vmatprep.subr.bf16.mxu0 0
      %1674 = vmatpush1.bf16.msra.mxu0 0
      %1675 = vmatprep.subr.bf16.mxu0 0
      %1676 = vmatpush1.bf16.msra.mxu0 0
      %1677 = vmatprep.subr.bf16.mxu0 0
      %1678 = vmatpush1.bf16.msra.mxu0 0
      %1679 = vmatprep.subr.bf16.mxu0 0
      %1680 = vmatpush1.bf16.msra.mxu0 0
      %1681 = vmatprep.subr.bf16.mxu0 0
      %1682 = vmatpush1.bf16.msra.mxu0 0
      %1683 = vmatprep.subr.bf16.mxu0 0
      %1684 = vmatpush1.bf16.msra.mxu0 0
      %1685 = vmatprep.subr.bf16.mxu0 0
      %1686 = vmatpush1.bf16.msra.mxu0 0
      %1687 = vmatprep.mubr.bf16.mxu0 0
      %1688 = vmatmul.mubr.bf16.gmra.mrb[0].mxu0 %v1629
      %v1689 = vpop.f32.mrb[0].mxu0
      %v1690 = vadd.f32 0.0, %v1689
      %v1691 = vpop.f32.mrb[0].mxu0
      %v1692 = vpop.f32.mrb[0].mxu0
      %v1693 = vadd.f32 0.0, %v1692
      %v1694 = vpop.f32.mrb[0].mxu0
      %1695 = vmatprep.mubr.bf16.mxu0 0
      %1696 = vmatmul.mubr.bf16.gmra.mrb[0].mxu0 %v1632
      %v1697 = vpop.f32.mrb[0].mxu0
      %v1698 = vadd.f32 0.0, %v1697
      %v1699 = vpop.f32.mrb[0].mxu0
      %v1700 = vpop.f32.mrb[0].mxu0
      %v1701 = vadd.f32 0.0, %v1700
      %v1702 = vpop.f32.mrb[0].mxu0
      %1703 = vmatprep.mubr.bf16.mxu0 0
      %1704 = vmatmul.mubr.bf16.gmra.mrb[0].mxu0 %v1635
      %v1705 = vpop.f32.mrb[0].mxu0
      %v1706 = vadd.f32 0.0, %v1705
      %v1707 = vpop.f32.mrb[0].mxu0
      %v1708 = vpop.f32.mrb[0].mxu0
      %v1709 = vadd.f32 0.0, %v1708
      %v1710 = vpop.f32.mrb[0].mxu0
      %1711 = vmatprep.mubr.bf16.mxu0 0
      %1712 = vmatmul.mubr.bf16.gmra.mrb[0].mxu0 %v1638
      %v1713 = vpop.f32.mrb[0].mxu0
      %v1714 = vadd.f32 0.0, %v1713
      %v1715 = vpop.f32.mrb[0].mxu0
      %v1716 = vpop.f32.mrb[0].mxu0
      %v1717 = vadd.f32 0.0, %v1716
      %v1718 = vpop.f32.mrb[0].mxu0
      %1719 = vmatprep.mubr.bf16.mxu0 0
      %1720 = vmatmul.mubr.bf16.gmra.mrb[0].mxu0 %v1641
      %v1721 = vpop.f32.mrb[0].mxu0
      %v1722 = vadd.f32 0.0, %v1721
      %v1723 = vpop.f32.mrb[0].mxu0
      %v1724 = vpop.f32.mrb[0].mxu0
      %v1725 = vadd.f32 0.0, %v1724
      %v1726 = vpop.f32.mrb[0].mxu0
      %1727 = vmatprep.mubr.bf16.mxu0 0
      %1728 = vmatmul.mubr.bf16.gmra.mrb[0].mxu0 %v1644
      %v1729 = vpop.f32.mrb[0].mxu0
      %v1730 = vadd.f32 0.0, %v1729
      %v1731 = vpop.f32.mrb[0].mxu0
      %v1732 = vpop.f32.mrb[0].mxu0
      %v1733 = vadd.f32 0.0, %v1732
      %v1734 = vpop.f32.mrb[0].mxu0
      %1735 = vmatprep.mubr.bf16.mxu0 0
      %1736 = vmatmul.mubr.bf16.gmra.mrb[0].mxu0 %v1647
      %v1737 = vpop.f32.mrb[0].mxu0
      %v1738 = vadd.f32 0.0, %v1737
      %v1739 = vpop.f32.mrb[0].mxu0
      %v1740 = vpop.f32.mrb[0].mxu0
      %v1741 = vadd.f32 0.0, %v1740
      %v1742 = vpop.f32.mrb[0].mxu0
      %1743 = vmatprep.mubr.bf16.mxu0 0
      %1744 = vmatmul.mubr.bf16.gmra.mrb[0].mxu0 %v1650
      %v1745 = vpop.f32.mrb[0].mxu0
      %v1746 = vadd.f32 0.0, %v1745
      %v1747 = vpop.f32.mrb[0].mxu0
      %v1748 = vpop.f32.mrb[0].mxu0
      %v1749 = vadd.f32 0.0, %v1748
      %v1750 = vpop.f32.mrb[0].mxu0
      %1751 = vdwg.mxu0
      %v1752 = vadd.f32 %v1584, %v1690
      %v1753 = vadd.f32 %v1585, %v1693
      %v1754 = vadd.f32 %v1586, %v1698
      %v1755 = vadd.f32 %v1587, %v1701
      %v1756 = vadd.f32 %v1588, %v1706
      %v1757 = vadd.f32 %v1589, %v1709
      %v1758 = vadd.f32 %v1590, %v1714
      %v1759 = vadd.f32 %v1591, %v1717
      %v1760 = vadd.f32 %v1592, %v1722
      %v1761 = vadd.f32 %v1593, %v1725
      %v1762 = vadd.f32 %v1594, %v1730
      %v1763 = vadd.f32 %v1595, %v1733
      %v1764 = vadd.f32 %v1596, %v1738
      %v1765 = vadd.f32 %v1597, %v1741
      %v1766 = vadd.f32 %v1598, %v1746
      %v1767 = vadd.f32 %v1599, %v1749
      %v1768 = vld [vmem:[%s269] sm:$0x1]
      %v1770 = vlaneseq
      %v1771 = vshrl.u32 %v1770, 7
      %v1772 = vsub.s32 0, %v1771
      %v1773 = vrot.slane %v1768, %v1772
      %v1775 = vadd.f32 %v1752, %v1773
      %v1776 = vadd.f32 %v1753, %v1773
      %v1777 = vadd.f32 %v1754, %v1773
      %v1778 = vadd.f32 %v1755, %v1773
      %v1779 = vadd.f32 %v1756, %v1773
      %v1780 = vadd.f32 %v1757, %v1773
      %v1781 = vadd.f32 %v1758, %v1773
      %v1782 = vadd.f32 %v1759, %v1773
      %v1783 = vadd.f32 %v1760, %v1773
      %v1784 = vadd.f32 %v1761, %v1773
      %v1785 = vadd.f32 %v1762, %v1773
      %v1786 = vadd.f32 %v1763, %v1773
      %v1787 = vadd.f32 %v1764, %v1773
      %v1788 = vadd.f32 %v1765, %v1773
      %v1789 = vadd.f32 %v1766, %v1773
      %v1790 = vadd.f32 %v1767, %v1773
      %v1791 = vld [vmem:[%s272] sm:$0x1]
      %v1793 = vlaneseq
      %v1794 = vshrl.u32 %v1793, 7
      %v1795 = vsub.s32 0, %v1794
      %v1796 = vrot.slane %v1791, %v1795
      %v1798 = vmul.f32 %v1775, %v1796
      %v1799 = vmul.f32 %v1776, %v1796
      %v1800 = vmul.f32 %v1777, %v1796
      %v1801 = vmul.f32 %v1778, %v1796
      %v1802 = vmul.f32 %v1779, %v1796
      %v1803 = vmul.f32 %v1780, %v1796
      %v1804 = vmul.f32 %v1781, %v1796
      %v1805 = vmul.f32 %v1782, %v1796
      %v1806 = vmul.f32 %v1783, %v1796
      %v1807 = vmul.f32 %v1784, %v1796
      %v1808 = vmul.f32 %v1785, %v1796
      %v1809 = vmul.f32 %v1786, %v1796
      %v1810 = vmul.f32 %v1787, %v1796
      %v1811 = vmul.f32 %v1788, %v1796
      %v1812 = vmul.f32 %v1789, %v1796
      %v1813 = vmul.f32 %v1790, %v1796
      %v1814 = vld [vmem:[%s275] sm:$0x1]
      %v1816 = vlaneseq
      %v1817 = vshrl.u32 %v1816, 7
      %v1818 = vsub.s32 0, %v1817
      %v1819 = vrot.slane %v1814, %v1818
      %v1821 = vadd.f32 %v1798, %v1819
      %v1822 = vadd.f32 %v1799, %v1819
      %v1823 = vadd.f32 %v1800, %v1819
      %v1824 = vadd.f32 %v1801, %v1819
      %v1825 = vadd.f32 %v1802, %v1819
      %v1826 = vadd.f32 %v1803, %v1819
      %v1827 = vadd.f32 %v1804, %v1819
      %v1828 = vadd.f32 %v1805, %v1819
      %v1829 = vadd.f32 %v1806, %v1819
      %v1830 = vadd.f32 %v1807, %v1819
      %v1831 = vadd.f32 %v1808, %v1819
      %v1832 = vadd.f32 %v1809, %v1819
      %v1833 = vadd.f32 %v1810, %v1819
      %v1834 = vadd.f32 %v1811, %v1819
      %v1835 = vadd.f32 %v1812, %v1819
      %v1836 = vadd.f32 %v1813, %v1819
      %v1837 = vmax.f32 %v1821, 0.0
      %v1838 = vmax.f32 %v1822, 0.0
      %v1839 = vmax.f32 %v1823, 0.0
      %v1840 = vmax.f32 %v1824, 0.0
      %v1841 = vmax.f32 %v1825, 0.0
      %v1842 = vmax.f32 %v1826, 0.0
      %v1843 = vmax.f32 %v1827, 0.0
      %v1844 = vmax.f32 %v1828, 0.0
      %v1845 = vmax.f32 %v1829, 0.0
      %v1846 = vmax.f32 %v1830, 0.0
      %v1847 = vmax.f32 %v1831, 0.0
      %v1848 = vmax.f32 %v1832, 0.0
      %v1849 = vmax.f32 %v1833, 0.0
      %v1850 = vmax.f32 %v1834, 0.0
      %v1851 = vmax.f32 %v1835, 0.0
      %v1852 = vmax.f32 %v1836, 0.0
      %v1853 = vpack.c.bf16 %v1838, %v1837
      %v1854 = vpack.c.bf16 %v1840, %v1839
      %v1855 = vpack.c.bf16 %v1842, %v1841
      %v1856 = vpack.c.bf16 %v1844, %v1843
      %v1857 = vpack.c.bf16 %v1846, %v1845
      %v1858 = vpack.c.bf16 %v1848, %v1847
      %v1859 = vpack.c.bf16 %v1850, %v1849
      %v1860 = vpack.c.bf16 %v1852, %v1851
      %v1869 = vunpack.c.l.b16 %v1853
      %v1870 = vunpack.c.h.b16 %v1853
      %v1871 = vunpack.c.l.b16 %v1854
      %v1872 = vunpack.c.h.b16 %v1854
      %v1873 = vunpack.c.l.b16 %v1855
      %v1874 = vunpack.c.h.b16 %v1855
      %v1875 = vunpack.c.l.b16 %v1856
      %v1876 = vunpack.c.h.b16 %v1856
      %v1877 = vunpack.c.l.b16 %v1857
      %v1878 = vunpack.c.h.b16 %v1857
      %v1879 = vunpack.c.l.b16 %v1858
      %v1880 = vunpack.c.h.b16 %v1858
      %v1881 = vunpack.c.l.b16 %v1859
      %v1882 = vunpack.c.h.b16 %v1859
      %v1883 = vunpack.c.l.b16 %v1860
      %v1884 = vunpack.c.h.b16 %v1860
      %v1885 = vpack.c.b16 %v1869, %v1869
      %v1886 = vpack.c.b16 %v1870, %v1870
      %v1887 = vpack.c.b16 %v1871, %v1871
      %v1888 = vpack.c.b16 %v1872, %v1872
      %v1889 = vpack.c.b16 %v1873, %v1873
      %v1890 = vpack.c.b16 %v1874, %v1874
      %v1891 = vpack.c.b16 %v1875, %v1875
      %v1892 = vpack.c.b16 %v1876, %v1876
      %v1893 = vpack.c.b16 %v1877, %v1877
      %v1894 = vpack.c.b16 %v1878, %v1878
      %v1895 = vpack.c.b16 %v1879, %v1879
      %v1896 = vpack.c.b16 %v1880, %v1880
      %v1897 = vpack.c.b16 %v1881, %v1881
      %v1898 = vpack.c.b16 %v1882, %v1882
      %v1899 = vpack.c.b16 %v1883, %v1883
      %v1900 = vpack.c.b16 %v1884, %v1884
      %vm1917 = vcmask 519168
      %1918 = vst.msk [vmem:[%s283] sm:$0xf] %vm1917, %v1885
      %1919 = vst.msk [vmem:[%s283 + $0x4] sm:$0xf] %vm1917, %v1886
      %1920 = vst.msk [vmem:[%s283 + $0x8] sm:$0xf] %vm1917, %v1887
      %1921 = vst.msk [vmem:[%s283 + $0xc] sm:$0xf] %vm1917, %v1888
      %1922 = vst.msk [vmem:[%s283 + $0x10] sm:$0xf] %vm1917, %v1889
      %1923 = vst.msk [vmem:[%s283 + $0x14] sm:$0xf] %vm1917, %v1890
      %1924 = vst.msk [vmem:[%s283 + $0x18] sm:$0xf] %vm1917, %v1891
      %1925 = vst.msk [vmem:[%s283 + $0x1c] sm:$0xf] %vm1917, %v1892
      %1926 = vst.msk [vmem:[%s283 + $0x20] sm:$0xf] %vm1917, %v1893
      %1927 = vst.msk [vmem:[%s283 + $0x24] sm:$0xf] %vm1917, %v1894
      %1928 = vst.msk [vmem:[%s283 + $0x28] sm:$0xf] %vm1917, %v1895
      %1929 = vst.msk [vmem:[%s283 + $0x2c] sm:$0xf] %vm1917, %v1896
      %1930 = vst.msk [vmem:[%s283 + $0x30] sm:$0xf] %vm1917, %v1897
      %1931 = vst.msk [vmem:[%s283 + $0x34] sm:$0xf] %vm1917, %v1898
      %1932 = vst.msk [vmem:[%s283 + $0x38] sm:$0xf] %vm1917, %v1899
      %1933 = vst.msk [vmem:[%s283 + $0x3c] sm:$0xf] %vm1917, %v1900
      %s1934 = smul.u32 16, %s20
      %p1935 = scmp.lt.s32.totalorder %s1934, 95
      %s1936 = scalar_select %p1935, %s1934, 95
      %p1937 = scmp.lt.s32.totalorder %s21, 0
      %s1938 = scalar_select %p1937, %s21, 0
      %s1939 = sadd.s32 %s1938, %s1936
      %s1940 = smul.addr %s1939, 4
      %s1941 = scalar_lea.vmem %s5, %s1940
      // Predicated region
      $region41: #{tpu_custom_call.1} parent=39 // pred_check
        %p1942 = pneg %p173
      $region42: #{tpu_custom_call.1} parent=39 // pred_check_branch
        %1944 = sbr.rel (%p1942) target = $region44
      $region43: #{tpu_custom_call.1} parent=39 // pred_region
        %s1945 = smul.u32 16, %s20
      $region44: #{tpu_custom_call.1} parent=39 // pred_fallthru
        _
    $region40: #{tpu_custom_call.1} parent=5 // pred_fallthru
      _
    %p1946 = scmp.le.s32.totalorder 2, %s11
    // Predicated region
    $region45: #{tpu_custom_call.1} parent=5 // pred_check
      %p1947 = pneg %p1946
    $region46: #{tpu_custom_call.1} parent=5 // pred_check_branch
      %1949 = sbr.rel (%p1947) target = $region48
    $region47: #{tpu_custom_call.1} parent=5 // pred_region
      %s1950 = ssub.s32 %s11, 2
      // Predicated region
      $region49: #{tpu_custom_call.1} parent=47 // pred_check
        %p1951 = pneg %p179
      $region50: #{tpu_custom_call.1} parent=47 // pred_check_branch
        %1953 = sbr.rel (%p1951) target = $region52
      $region51: #{tpu_custom_call.1} parent=47 // pred_region
        %s1954 = smul.u32 16, %s22
        %p1955 = scmp.lt.s32.totalorder %s1954, 95
        %s1956 = scalar_select %p1955, %s1954, 95
        %p1957 = scmp.lt.s32.totalorder %s23, 0
        %s1958 = scalar_select %p1957, %s23, 0
        %s1959 = sadd.s32 %s1958, %s1956
        %s1960 = smul.addr %s1959, 4
        %s1961 = scalar_lea.vmem %s5, %s1960
      $region52: #{tpu_custom_call.1} parent=47 // pred_fallthru
        _
    $region48: #{tpu_custom_call.1} parent=5 // pred_fallthru
      _
  $region6: #{tpu_custom_call.1} parent=0 // loop_footer
    %s15 = sadd.s32 1, %s11
  $region7: #{tpu_custom_call.1} parent=0 // loop_footer_branch
    %10 = sbr.rel target = $region3
  $region8: #{tpu_custom_call.1} parent=0 // loop_exit
    _

</llo_original>
